<compile_context>
chip_gen: v6e
topology: v6e:2x2x1
jax: 0.10.0
libtpu: 0.0.40
codegen_flags: <defaults>
</compile_context>

<pallas_src>
import math

import jax
import jax.numpy as jnp
from jax.experimental import pallas as pl
from jax.experimental.pallas import tpu as pltpu


# ---------------------------------------------------------------------------
# Fused forward kernel (one grid step == whole network over a batch chunk)
# ---------------------------------------------------------------------------

def _make_fused_kernel(meta, n_batch, compute_dtype):
    """meta: static layer descriptors (each layer consumes 2 weight refs).

    n_batch:       batch elements folded into the row (M) dimension of this
                   grid step; activations are (n_batch*T, V*C), rows ordered
                   (batch, time).
    compute_dtype: dtype fed to the MXU (bf16 in the perf config); every dot
                   accumulates in f32 via preferred_element_type.
    """

    def kernel(*refs):
        x_ref = refs[0]
        o_ref = refs[-1]
        wrefs = refs[1:-1]

        h = x_ref[...]                               # (n_batch*T, V*C), f32
        i = 0
        for op in meta:                              # static Python unroll
            a_ref, b_ref = wrefs[i], wrefs[i + 1]
            i += 2
            kind = op['kind']

            if kind == 'tconv_glu':
                # Causal temporal conv (Kt taps) + GLU + residual Align fused
                # into ONE matmul: per batch element the Kt shifted slices are
                # concatenated along lanes; the tap matrices were concatenated
                # along the contraction axis host-side.  Tap Kt-1 also carries
                # the Align(1x1) "R" columns.
                Kt, VCo = op['Kt'], op['VCo']
                Tcur = h.shape[0] // n_batch
                Tout = Tcur - Kt + 1
                slabs = []
                for b in range(n_batch):
                    base = b * Tcur
                    slabs.append(jnp.concatenate(
                        [h[base + k:base + k + Tout, :] for k in range(Kt)],
                        axis=-1))                    # (Tout, Kt*V*Cin)
                hh = jnp.concatenate(slabs, axis=0)  # (n_batch*Tout, Kt*V*Cin)
                acc = jnp.dot(hh.astype(compute_dtype), a_ref[...],
                              preferred_element_type=jnp.float32) + b_ref[...]
                p = acc[:, :VCo]                     # conv "P" half
                q = acc[:, VCo:2 * VCo]              # conv "Q" (gate) half
                r = acc[:, 2 * VCo:]                 # residual Align(x[Kt-1:])
                h = (p + r) * jax.nn.sigmoid(q)      # GLU

            elif kind in ('graphconv', 'fc_relu'):
                # graphconv: Align + Chebyshev mix + bias + residual folded
                #            into one (V*Cin, V*Cout) matrix host-side; ReLU
                #            from STConvBlock applied here.
                # fc_relu:   per-vertex fc1 (kron(I_V, w1)) + ReLU.
                h = jnp.maximum(
                    jnp.dot(h.astype(compute_dtype), a_ref[...],
                            preferred_element_type=jnp.float32) + b_ref[...],
                    0.0)

            elif kind == 'layernorm':
                # LayerNorm over (V, C) == row-wise LN over the V*C lane axis.
                m = jnp.mean(h, axis=-1, keepdims=True)
                c = h - m
                var = jnp.mean(c * c, axis=-1, keepdims=True)
                h = c * jax.lax.rsqrt(var + op['eps']) * a_ref[...] + b_ref[...]

            elif kind == 'pool_fc':
                # Global mean over (T, V) BEFORE fc2 (exact: fc2 affine, mean
                # linear).  a_ref = kron-tiled w2 / V, so
                # dot(mean_T(h), a_ref) == mean_{T,V}(h @ w2).
                Tcur = h.shape[0] // n_batch
                pooled = jnp.concatenate(
                    [jnp.mean(h[b * Tcur:(b + 1) * Tcur, :], axis=0,
                              keepdims=True) for b in range(n_batch)],
                    axis=0)                          # (n_batch, V*C)
                o_ref[0] = (jnp.dot(pooled.astype(compute_dtype), a_ref[...],
                                    preferred_element_type=jnp.float32)
                            + b_ref[...])

    return kernel


def _const_map(rank):
    return lambda g: (0,) * rank


# ---------------------------------------------------------------------------
# Host-side (one-time) weight repacking into the lane-dense kernel layout
# ---------------------------------------------------------------------------

def _kron_eye(V, w):
    """Block-diagonal expansion kron(I_V, w): (Cin, Cout) -> (V*Cin, V*Cout)."""
    Cin, Cout = w.shape
    return jnp.einsum('uv,cd->ucvd', jnp.eye(V, dtype=w.dtype), w
                      ).reshape(V * Cin, V * Cout)


def _tile_v(b, V):
    """Tile a (1, C) bias over vertices -> (1, V*C) in (v, c) order."""
    return jnp.tile(b, (1, V))


def _cheb_basis(gso, Ks):
    """T_k(gso), k = 0..Ks-1, standard recurrence T_k = 2*gso@T_{k-1} - T_{k-2}."""
    V = gso.shape[0]
    Ts = [jnp.eye(V, dtype=gso.dtype)]
    if Ks > 1:
        Ts.append(gso)
    for _ in range(2, Ks):
        Ts.append(2.0 * (gso @ Ts[-1]) - Ts[-2])
    return jnp.stack(Ts[:Ks], axis=0)              # (Ks, V, V)


def _pad_channels(c, n_vertex):
    """Smallest c' >= c such that n_vertex*c' is a multiple of 128 lanes.
    Only pads when the step is small; otherwise returns c unchanged."""
    step = 128 // math.gcd(n_vertex, 128)
    if step > 8:
        return c
    return -(-c // step) * step


def _pack_temporal(p, V, cin_phys=None):
    """Fuse Kt temporal taps + GLU halves + residual Align into one matrix.

    Returns Wt of shape (Kt*V*Cin, 3*V*Cout) (taps stacked along the
    contraction axis, matching the kernel's lane-concat of shifted slices)
    and the combined bias.  cin_phys optionally zero-pads the input channels
    (to consume a lane-padded upstream activation)."""
    conv_w, conv_b = p['conv_w'], p['conv_b']      # (Kt, Cin, 2*Cout), (1, 2*Cout)
    align_w, align_b = p['align_w'], p['align_b']  # (Cin, Cout),       (1, Cout)
    Kt, Cin, Cout2 = conv_w.shape
    Cout = Cout2 // 2
    if cin_phys is not None and cin_phys > Cin:
        pad = cin_phys - Cin
        conv_w = jnp.pad(conv_w, ((0, 0), (0, pad), (0, 0)))
        align_w = jnp.pad(align_w, ((0, pad), (0, 0)))
        Cin = cin_phys
    zero = jnp.zeros((Cin, Cout), conv_w.dtype)
    taps = []
    for k in range(Kt):
        wr = align_w if k == Kt - 1 else zero      # Align consumes the x[Kt-1:] tap
        taps.append(jnp.concatenate(
            [_kron_eye(V, conv_w[k, :, :Cout]),    # P block
             _kron_eye(V, conv_w[k, :, Cout:]),    # Q block
             _kron_eye(V, wr)],                    # R (residual align) block
            axis=1))
    Wt = jnp.concatenate(taps, axis=0)             # (Kt*V*Cin, 3*V*Cout)
    b = jnp.concatenate([_tile_v(conv_b[:, :Cout], V),
                         _tile_v(conv_b[:, Cout:], V),
                         _tile_v(align_b, V)], axis=1)
    return [Wt, b], dict(kind='tconv_glu', Kt=Kt, VCo=V * Cout)


def _pack_graphconv(p, V, cm_phys=None):
    """Fold Align + Chebyshev graph conv + bias + residual into one matrix.

    M[(i,c),(v,e)] = sum_k T_k(gso)[v,i]*(A W_k)[c,e] + delta_iv*A[c,e].
    cm_phys optionally zero-pads the output channels to keep 128-lane rows."""
    A, ab = p['align_w'], p['align_b']             # (Cin, Cm), (1, Cm)
    W, cb = p['cheb_w'], p['cheb_b']               # (Ks, Cm, Cm), (1, Cm)
    Ks, gso = p['Ks'], p['gso']
    Cin, Cm = A.shape
    Cp = Cm if cm_phys is None else cm_phys
    Tk = _cheb_basis(gso, Ks)                      # (Ks, V, V)
    AW = jnp.einsum('cd,kde->kce', A, W)           # A @ W_k : (Ks, Cin, Cm)
    M4 = jnp.einsum('kvi,kce->icve', Tk, AW)       # (V, Cin, V, Cm)
    M4 = M4 + jnp.einsum('iv,ce->icve', jnp.eye(V, dtype=A.dtype), A)
    # bias: Cheb mix of the align bias + cheb bias + residual align bias
    abW = jnp.einsum('d,kde->ke', ab[0], W)        # (Ks, Cm)
    rowsum = jnp.sum(Tk, axis=2)                   # (Ks, V)
    bv = jnp.einsum('kv,ke->ve', rowsum, abW) + cb + ab    # (V, Cm)
    if Cp > Cm:                                    # exact zero-padding
        M4 = jnp.pad(M4, ((0, 0), (0, 0), (0, 0), (0, Cp - Cm)))
        bv = jnp.pad(bv, ((0, 0), (0, Cp - Cm)))
    M = M4.reshape(V * Cin, V * Cp)
    return [M, bv.reshape(1, V * Cp)], dict(kind='graphconv')


def pack_params(params, V, weight_dtype=jnp.float32):
    """Flatten all layers into (weights list, static meta list).

    Matmul matrices are stored in `weight_dtype` (bf16 in the perf config);
    biases / LayerNorm params stay f32 (added to f32 accumulators)."""
    weights, meta = [], []
    matmul_kinds = ('tconv_glu', 'graphconv', 'fc_relu', 'pool_fc')

    def add(ws, m):
        if m['kind'] in matmul_kinds:
            ws = [ws[0].astype(weight_dtype)] + [w.astype(jnp.float32)
                                                 for w in ws[1:]]
        else:
            ws = [w.astype(jnp.float32) for w in ws]
        weights.extend(ws)
        meta.append(m)

    for blk in params['st_blocks']:
        add(*_pack_temporal(blk['tc1'], V))
        cm = blk['gc']['cheb_w'].shape[-1]
        cm_p = _pad_channels(cm, V)                # keep 128-lane activations
        add(*_pack_graphconv(blk['gc'], V, cm_phys=cm_p))
        add(*_pack_temporal(blk['tc2'], V, cin_phys=cm_p))
        add([blk['ln_gamma'].reshape(1, -1), blk['ln_beta'].reshape(1, -1)],
            dict(kind='layernorm', eps=1e-5))

    out = params['output']
    add(*_pack_temporal(out['tc1'], V))
    add([out['ln_gamma'].reshape(1, -1), out['ln_beta'].reshape(1, -1)],
        dict(kind='layernorm', eps=1e-5))
    add([_kron_eye(V, out['w1']), _tile_v(out['b1'], V)], dict(kind='fc_relu'))
    add([jnp.tile(out['w2'], (V, 1)) / V, out['b2']], dict(kind='pool_fc'))
    return weights, meta


# ---------------------------------------------------------------------------
# pallas_call wrapper
# ---------------------------------------------------------------------------

def build_stgcn_forward(params, n_vertex, weight_dtype=jnp.float32,
                        batch_chunks=1):
    """Build the fused forward.

    batch_chunks > 1 splits the batch across a small "parallel" leading grid
    axis (useful on v7x to put one chunk on each TensorCore).  The default of
    1 folds the whole batch into the matmul row dimension, which is best on
    single-TensorCore v5e/v6e — and also here, since the weight DMA dominates
    and would be duplicated per core."""
    Ko = params['output']['tc1']['Kt']
    assert Ko > 1, "only the Ko > 1 OutputBlock branch is implemented"
    # TODO(synk): the Ko == 0 fc1/fc2-only branch is not implemented.
    weights, meta = pack_params(params, n_vertex, weight_dtype)
    end_c = weights[-1].shape[-1]

    def forward(x_nchw):
        # PyTorch NCHW [B, C, T, V] -> lane-dense rows [(b, t), V*C]
        x = jnp.transpose(x_nchw, (0, 2, 3, 1)).astype(jnp.float32)
        B, T, V, C = x.shape
        assert B % batch_chunks == 0
        B_per = B // batch_chunks
        x2 = x.reshape(B * T, V * C)

        kernel = _make_fused_kernel(meta, B_per, weight_dtype)

        # Whole-array, constant-index weight blocks stay VMEM-resident for the
        # entire call.  NOTE: with a single grid step there is nothing to
        # double-buffer; if the grid grows (bigger graphs -> tiled O(V^2*C^2)
        # folded weights), mark these pipeline_mode=pl.Buffered(1) and budget
        # VMEM explicitly (v7x's 64 MiB is the first wall).
        in_specs = [pl.BlockSpec((B_per * T, V * C), lambda g: (g, 0))]
        in_specs += [pl.BlockSpec(w.shape, _const_map(w.ndim)) for w in weights]

        # Advisory cost estimate so XLA schedules around the fused call.
        flops, trans, tcur = 0, 0, T
        for w, op in zip(weights[0::2], meta):
            if op['kind'] == 'layernorm':
                trans += B * tcur                       # rsqrt
                continue
            if op['kind'] == 'tconv_glu':
                tcur = tcur - op['Kt'] + 1
                rows = B * tcur
                trans += rows * op['VCo']               # sigmoid gate
            elif op['kind'] == 'pool_fc':
                rows = B
            else:
                rows = B * tcur
            flops += 2 * rows * int(w.shape[0]) * int(w.shape[1])
        bytes_accessed = (int(x2.size) * 4
                          + sum(int(w.size) * w.dtype.itemsize for w in weights)
                          + B * end_c * 4)

        out = pl.pallas_call(
            kernel,
            out_shape=jax.ShapeDtypeStruct((batch_chunks, B_per, end_c),
                                           jnp.float32),
            grid=(batch_chunks,),
            in_specs=in_specs,
            out_specs=pl.BlockSpec((1, B_per, end_c), lambda g: (g, 0, 0)),
            compiler_params=pltpu.CompilerParams(
                dimension_semantics=("parallel",),
                vmem_limit_bytes=32 * 1024 * 1024),
            cost_estimate=pl.CostEstimate(flops=flops, transcendentals=trans,
                                          bytes_accessed=bytes_accessed),
        )(x2, *weights)
        return out.reshape(B, end_c)                    # (B, end_c)

    return forward


# ---------------------------------------------------------------------------
# Pure-JAX mirror of the packed kernel algebra (for tight exactness checks)
# ---------------------------------------------------------------------------

def packed_ref_forward(x_nchw, params, n_vertex):
    """Runs the same folded-weight algebra as the kernel body, in pure f32
    JAX.  Used to validate the host-side packing/fusion against the textbook
    reference with a tight tolerance, independent of MXU precision."""
    weights, meta = pack_params(params, n_vertex, weight_dtype=jnp.float32)
    x = jnp.transpose(x_nchw, (0, 2, 3, 1)).astype(jnp.float32)
    B, T, V, C = x.shape
    h = x.reshape(B * T, V * C)
    i = 0
    outs = None
    for op in meta:
        a, b = weights[i], weights[i + 1]
        i += 2
        if op['kind'] == 'tconv_glu':
            Kt, VCo = op['Kt'], op['VCo']
            Tcur = h.shape[0] // B
            Tout = Tcur - Kt + 1
            slabs = [jnp.concatenate([h[bb * Tcur + k:bb * Tcur + k + Tout]
                                      for k in range(Kt)], axis=-1)
                     for bb in range(B)]
            hh = jnp.concatenate(slabs, axis=0)
            acc = hh @ a + b
            h = (acc[:, :VCo] + acc[:, 2 * VCo:]) * jax.nn.sigmoid(
                acc[:, VCo:2 * VCo])
        elif op['kind'] in ('graphconv', 'fc_relu'):
            h = jnp.maximum(h @ a + b, 0.0)
        elif op['kind'] == 'layernorm':
            m = h.mean(axis=-1, keepdims=True)
            c = h - m
            v = (c * c).mean(axis=-1, keepdims=True)
            h = c / jnp.sqrt(v + op['eps']) * a + b
        elif op['kind'] == 'pool_fc':
            Tcur = h.shape[0] // B
            pooled = jnp.concatenate(
                [h[bb * Tcur:(bb + 1) * Tcur].mean(axis=0, keepdims=True)
                 for bb in range(B)], axis=0)
            outs = pooled @ a + b
    return outs


# ---------------------------------------------------------------------------
# Parameter initialization (deterministic, synthetic)
# ---------------------------------------------------------------------------

def make_gso(n):
    """Ring-graph rescaled Laplacian (L_sym - I), eigenvalues in [-1, 1]."""
    idx = jnp.arange(n)
    A = jnp.zeros((n, n), jnp.float32)
    A = A.at[idx, (idx + 1) % n].set(1.0)
    A = A.at[idx, (idx - 1) % n].set(1.0)
    dinv = 1.0 / jnp.sqrt(A.sum(axis=1))
    return (-(dinv[:, None] * A * dinv[None, :])).astype(jnp.float32)


def init_temporal_params(key, Kt, c_in, c_out):
    k1, k2, k3, k4 = jax.random.split(key, 4)
    conv_w = jax.random.normal(k1, (Kt, c_in, 2 * c_out), jnp.float32) * 0.1
    conv_b = jax.random.normal(k2, (1, 2 * c_out), jnp.float32) * 0.1
    if c_in > c_out:  # learned 1x1 conv alignment
        align_w = jax.random.normal(k3, (c_in, c_out), jnp.float32) * 0.1
        align_b = jax.random.normal(k4, (1, c_out), jnp.float32) * 0.1
    else:             # identity / zero-pad alignment expressed as a matrix
        align_w = jnp.eye(c_in, c_out, dtype=jnp.float32)
        align_b = jnp.zeros((1, c_out), jnp.float32)
    return dict(conv_w=conv_w, conv_b=conv_b, align_w=align_w, align_b=align_b, Kt=Kt)


def init_graphconv_params(key, c_in, c_out, Ks, gso):
    k1, k2, k3, k4 = jax.random.split(key, 4)
    if c_in > c_out:
        align_w = jax.random.normal(k1, (c_in, c_out), jnp.float32) * 0.1
        align_b = jax.random.normal(k2, (1, c_out), jnp.float32) * 0.1
    else:
        align_w = jnp.eye(c_in, c_out, dtype=jnp.float32)
        align_b = jnp.zeros((1, c_out), jnp.float32)
    cheb_w = jax.random.normal(k3, (Ks, c_out, c_out), jnp.float32) * 0.1
    cheb_b = jax.random.normal(k4, (1, c_out), jnp.float32) * 0.1
    return dict(align_w=align_w, align_b=align_b, gso=gso,
                cheb_w=cheb_w, cheb_b=cheb_b, Ks=Ks)


def init_params(key, blocks, Kt, Ks, n_his, n_vertex):
    gso = make_gso(n_vertex)
    n_st = len(blocks) - 3
    keys = jax.random.split(key, n_st + 1)
    params = {'st_blocks': []}
    last_c = blocks[0][-1]
    for l in range(n_st):
        ch = blocks[l + 1]
        ks = jax.random.split(keys[l], 5)
        params['st_blocks'].append({
            'tc1': init_temporal_params(ks[0], Kt, last_c, ch[0]),
            'gc': init_graphconv_params(ks[1], ch[0], ch[1], Ks, gso),
            'tc2': init_temporal_params(ks[2], Kt, ch[1], ch[2]),
            'ln_gamma': 1.0 + 0.1 * jax.random.normal(ks[3], (n_vertex, ch[2]), jnp.float32),
            'ln_beta': 0.1 * jax.random.normal(ks[4], (n_vertex, ch[2]), jnp.float32),
        })
        last_c = ch[2]
    Ko = n_his - n_st * 2 * (Kt - 1)
    assert Ko > 1, "only the Ko > 1 OutputBlock branch is implemented"
    ko = jax.random.split(keys[-1], 7)
    c0, c1 = blocks[-2][0], blocks[-2][1]
    end_c = blocks[-1][0]
    params['output'] = {
        'tc1': init_temporal_params(ko[0], Ko, blocks[-3][-1], c0),
        'ln_gamma': 1.0 + 0.1 * jax.random.normal(ko[5], (n_vertex, c0), jnp.float32),
        'ln_beta': 0.1 * jax.random.normal(ko[6], (n_vertex, c0), jnp.float32),
        'w1': jax.random.normal(ko[1], (c0, c1), jnp.float32) * 0.1,
        'b1': jax.random.normal(ko[2], (1, c1), jnp.float32) * 0.1,
        'w2': jax.random.normal(ko[3], (c1, end_c), jnp.float32) * 0.1,
        'b2': jax.random.normal(ko[4], (1, end_c), jnp.float32) * 0.1,
    }
    return params


# ---------------------------------------------------------------------------
# Pure-JAX reference (textbook per-layer formulation, faithful to PyTorch)
# ---------------------------------------------------------------------------

def ref_temporal_glu(x, conv_w, conv_b, align_w, align_b, Kt):
    Cout = conv_w.shape[-1] // 2
    Tout = x.shape[1] - Kt + 1
    acc = sum(jnp.einsum('btvc,cd->btvd', x[:, k:k + Tout], conv_w[k])
              for k in range(Kt)) + conv_b[0]
    x_in = jnp.einsum('btvc,cd->btvd', x[:, Kt - 1:], align_w) + align_b[0]
    p, q = acc[..., :Cout], acc[..., Cout:]
    return (p + x_in) * jax.nn.sigmoid(q)           # GLU: (x_p + x_in) * sigmoid(x_q)


def ref_cheb(x, align_w, align_b, gso, cheb_w, cheb_b, Ks):
    xg = jnp.einsum('btvc,cd->btvd', x, align_w) + align_b[0]
    xs = [xg]
    if Ks > 1:
        xs.append(jnp.einsum('hi,btic->bthc', gso, xg))
    for k in range(2, Ks):
        xs.append(2.0 * jnp.einsum('hi,btic->bthc', gso, xs[-1]) - xs[-2])
    acc = sum(jnp.einsum('btvc,cd->btvd', xs[k], cheb_w[k])
              for k in range(Ks)) + cheb_b[0]
    return jnp.maximum(acc + xg, 0.0)               # residual add + ReLU


def ref_ln(x, g, b, eps=1e-5):
    m = x.mean(axis=(2, 3), keepdims=True)
    v = ((x - m) ** 2).mean(axis=(2, 3), keepdims=True)
    return (x - m) / jnp.sqrt(v + eps) * g + b


def ref_forward(x_nchw, params):
    x = jnp.transpose(x_nchw, (0, 2, 3, 1)).astype(jnp.float32)
    for blk in params['st_blocks']:
        x = ref_temporal_glu(x, **blk['tc1'])
        x = ref_cheb(x, **blk['gc'])
        x = ref_temporal_glu(x, **blk['tc2'])
        x = ref_ln(x, blk['ln_gamma'], blk['ln_beta'])
    out = params['output']
    x = ref_temporal_glu(x, **out['tc1'])
    x = ref_ln(x, out['ln_gamma'], out['ln_beta'])
    h = jnp.maximum(x @ out['w1'] + out['b1'][0], 0.0)
    y = h @ out['w2'] + out['b2'][0]
    return y.mean(axis=(1, 2))                      # global average pool over (T, V)


# ---------------------------------------------------------------------------
# Main
# ---------------------------------------------------------------------------

if __name__ == "__main__":
    # args / blocks consistent with the PyTorch module
    Kt, Ks, n_his, n_vertex, batch = 3, 3, 8, 16, 2
    blocks = [[2], [8, 4, 8], [8, 8], [1]]   # 1 ST block, Ko = 8 - 2*(Kt-1) = 4 > 1

    key = jax.random.PRNGKey(0)
    kx, kp = jax.random.split(key)
    # PyTorch input layout: [batch, features, time_steps, n_vertex]
    x = jax.random.normal(kx, (batch, blocks[0][-1], n_his, n_vertex), jnp.float32)

    params = init_params(kp, blocks, Kt, Ks, n_his, n_vertex)

    # --- tier 1: tight check of the host-side folding / layer fusion --------
    # Both sides are pure-JAX f32 (forced high matmul precision), so any
    # mismatch is a packing/algebra bug, not MXU rounding.
    with jax.default_matmul_precision("highest"):
        ref = jax.block_until_ready(ref_forward(x, params))
        packed = jax.block_until_ready(packed_ref_forward(x, params, n_vertex))
    assert bool(jnp.allclose(packed, ref, atol=1e-4, rtol=1e-4)), (packed, ref)

    # --- tier 2: fused Pallas kernel, performance config ---------------------
    # bf16 weights + bf16 MXU inputs, f32 accumulation; tolerance sized for
    # bf16 rounding (the exactness of the refactoring is asserted above).
    with jax.default_matmul_precision("highest"):   # affects weight folding only
        forward = build_stgcn_forward(params, n_vertex,
                                      weight_dtype=jnp.bfloat16,
                                      batch_chunks=1)
    out = jax.block_until_ready(forward(x))
    assert out.shape == (batch, blocks[-1][0]), out.shape
    assert bool(jnp.allclose(out, ref, atol=2e-2, rtol=5e-2)), (out, ref)

    print("KERNEL_OK")
</pallas_src>

<mosaic_0001>
module attributes {stable_mosaic.version = 11 : i64} {
  func.func @kernel(%arg0: i32, %arg1: memref<16x32xf32, #tpu.memory_space<vmem>>, %arg2: memref<96x384xbf16, #tpu.memory_space<vmem>>, %arg3: memref<1x384xf32, #tpu.memory_space<vmem>>, %arg4: memref<128x128xbf16, #tpu.memory_space<vmem>>, %arg5: memref<1x128xf32, #tpu.memory_space<vmem>>, %arg6: memref<384x384xbf16, #tpu.memory_space<vmem>>, %arg7: memref<1x384xf32, #tpu.memory_space<vmem>>, %arg8: memref<1x128xf32, #tpu.memory_space<vmem>>, %arg9: memref<1x128xf32, #tpu.memory_space<vmem>>, %arg10: memref<512x384xbf16, #tpu.memory_space<vmem>>, %arg11: memref<1x384xf32, #tpu.memory_space<vmem>>, %arg12: memref<1x128xf32, #tpu.memory_space<vmem>>, %arg13: memref<1x128xf32, #tpu.memory_space<vmem>>, %arg14: memref<128x128xbf16, #tpu.memory_space<vmem>>, %arg15: memref<1x128xf32, #tpu.memory_space<vmem>>, %arg16: memref<128x1xbf16, #tpu.memory_space<vmem>>, %arg17: memref<1x1xf32, #tpu.memory_space<vmem>>, %arg18: memref<1x2x1xf32, #tpu.memory_space<vmem>>) attributes {dimension_semantics = [#tpu.dimension_semantics<parallel>], iteration_bounds = array<i64: 1>, scalar_prefetch = 0 : i64, scratch_operands = 0 : i64, tpu.core_type = #tpu.core_type<tc>, window_params = [{transform_indices = @transform_0, window_bounds = array<i64: 16, 32>}, {pipeline_mode = #tpu.pipeline_mode<synchronous>, transform_indices = @transform_1, window_bounds = array<i64: 96, 384>}, {pipeline_mode = #tpu.pipeline_mode<synchronous>, transform_indices = @transform_2, window_bounds = array<i64: 1, 384>}, {pipeline_mode = #tpu.pipeline_mode<synchronous>, transform_indices = @transform_3, window_bounds = array<i64: 128, 128>}, {pipeline_mode = #tpu.pipeline_mode<synchronous>, transform_indices = @transform_4, window_bounds = array<i64: 1, 128>}, {pipeline_mode = #tpu.pipeline_mode<synchronous>, transform_indices = @transform_5, window_bounds = array<i64: 384, 384>}, {pipeline_mode = #tpu.pipeline_mode<synchronous>, transform_indices = @transform_6, window_bounds = array<i64: 1, 384>}, {pipeline_mode = #tpu.pipeline_mode<synchronous>, transform_indices = @transform_7, window_bounds = array<i64: 1, 128>}, {pipeline_mode = #tpu.pipeline_mode<synchronous>, transform_indices = @transform_8, window_bounds = array<i64: 1, 128>}, {pipeline_mode = #tpu.pipeline_mode<synchronous>, transform_indices = @transform_9, window_bounds = array<i64: 512, 384>}, {pipeline_mode = #tpu.pipeline_mode<synchronous>, transform_indices = @transform_10, window_bounds = array<i64: 1, 384>}, {pipeline_mode = #tpu.pipeline_mode<synchronous>, transform_indices = @transform_11, window_bounds = array<i64: 1, 128>}, {pipeline_mode = #tpu.pipeline_mode<synchronous>, transform_indices = @transform_12, window_bounds = array<i64: 1, 128>}, {pipeline_mode = #tpu.pipeline_mode<synchronous>, transform_indices = @transform_13, window_bounds = array<i64: 128, 128>}, {pipeline_mode = #tpu.pipeline_mode<synchronous>, transform_indices = @transform_14, window_bounds = array<i64: 1, 128>}, {pipeline_mode = #tpu.pipeline_mode<synchronous>, transform_indices = @transform_15, window_bounds = array<i64: 128, 1>}, {pipeline_mode = #tpu.pipeline_mode<synchronous>, transform_indices = @transform_16, window_bounds = array<i64: 1, 1>}, {transform_indices = @transform_17, window_bounds = array<i64: 1, 2, 1>}]} {
    %c0 = arith.constant 0 : index
    %c0_0 = arith.constant 0 : index
    %0 = vector.load %arg1[%c0, %c0_0] : memref<16x32xf32, #tpu.memory_space<vmem>>, vector<16x32xf32>
    %1 = vector.extract_strided_slice %0 {offsets = [0, 0], sizes = [6, 32], strides = [1, 1]} : vector<16x32xf32> to vector<6x32xf32>
    %2 = vector.extract_strided_slice %0 {offsets = [1, 0], sizes = [6, 32], strides = [1, 1]} : vector<16x32xf32> to vector<6x32xf32>
    %3 = vector.extract_strided_slice %0 {offsets = [2, 0], sizes = [6, 32], strides = [1, 1]} : vector<16x32xf32> to vector<6x32xf32>
    %4 = tpu.concatenate %1, %2, %3 in 1 : vector<6x32xf32>, vector<6x32xf32>, vector<6x32xf32> -> vector<6x96xf32>
    %5 = vector.extract_strided_slice %0 {offsets = [8, 0], sizes = [6, 32], strides = [1, 1]} : vector<16x32xf32> to vector<6x32xf32>
    %6 = vector.extract_strided_slice %0 {offsets = [9, 0], sizes = [6, 32], strides = [1, 1]} : vector<16x32xf32> to vector<6x32xf32>
    %7 = vector.extract_strided_slice %0 {offsets = [10, 0], sizes = [6, 32], strides = [1, 1]} : vector<16x32xf32> to vector<6x32xf32>
    %8 = tpu.concatenate %5, %6, %7 in 1 : vector<6x32xf32>, vector<6x32xf32>, vector<6x32xf32> -> vector<6x96xf32>
    %9 = tpu.concatenate %4, %8 in 0 : vector<6x96xf32>, vector<6x96xf32> -> vector<12x96xf32>
    %10 = arith.truncf %9 : vector<12x96xf32> to vector<12x96xbf16>
    %c0_1 = arith.constant 0 : index
    %c0_2 = arith.constant 0 : index
    %11 = vector.load %arg2[%c0_1, %c0_2] : memref<96x384xbf16, #tpu.memory_space<vmem>>, vector<96x384xbf16>
    %cst = arith.constant dense<0.000000e+00> : vector<12x384xf32>
    %12 = tpu.matmul %10, %11, %cst {dimension_numbers = #tpu.dot_dimension_numbers<[1], [0], [0], [1], [0, 0, 1, 1], [], []>} : vector<12x96xbf16>, vector<96x384xbf16>, vector<12x384xf32> -> vector<12x384xf32>
    %c0_3 = arith.constant 0 : index
    %c0_4 = arith.constant 0 : index
    %13 = vector.load %arg3[%c0_3, %c0_4] : memref<1x384xf32, #tpu.memory_space<vmem>>, vector<1x384xf32>
    %14 = vector.broadcast %13 : vector<1x384xf32> to vector<12x384xf32>
    %15 = arith.addf %12, %14 : vector<12x384xf32>
    %16 = vector.extract_strided_slice %15 {offsets = [0, 0], sizes = [12, 128], strides = [1, 1]} : vector<12x384xf32> to vector<12x128xf32>
    %17 = vector.extract_strided_slice %15 {offsets = [0, 128], sizes = [12, 128], strides = [1, 1]} : vector<12x384xf32> to vector<12x128xf32>
    %18 = vector.extract_strided_slice %15 {offsets = [0, 256], sizes = [12, 128], strides = [1, 1]} : vector<12x384xf32> to vector<12x128xf32>
    %19 = arith.addf %16, %18 : vector<12x128xf32>
    %20 = arith.negf %17 : vector<12x128xf32>
    %21 = math.exp %20 : vector<12x128xf32>
    %cst_5 = arith.constant 1.000000e+00 : f32
    %22 = vector.broadcast %cst_5 : f32 to vector<12x128xf32>
    %23 = arith.addf %22, %21 : vector<12x128xf32>
    %24 = arith.divf %22, %23 : vector<12x128xf32>
    %25 = arith.mulf %19, %24 : vector<12x128xf32>
    %26 = arith.truncf %25 : vector<12x128xf32> to vector<12x128xbf16>
    %c0_6 = arith.constant 0 : index
    %c0_7 = arith.constant 0 : index
    %27 = vector.load %arg4[%c0_6, %c0_7] : memref<128x128xbf16, #tpu.memory_space<vmem>>, vector<128x128xbf16>
    %cst_8 = arith.constant dense<0.000000e+00> : vector<12x128xf32>
    %28 = tpu.matmul %26, %27, %cst_8 {dimension_numbers = #tpu.dot_dimension_numbers<[1], [0], [0], [1], [0, 0, 1, 1], [], []>} : vector<12x128xbf16>, vector<128x128xbf16>, vector<12x128xf32> -> vector<12x128xf32>
    %c0_9 = arith.constant 0 : index
    %c0_10 = arith.constant 0 : index
    %29 = vector.load %arg5[%c0_9, %c0_10] : memref<1x128xf32, #tpu.memory_space<vmem>>, vector<1x128xf32>
    %30 = vector.broadcast %29 : vector<1x128xf32> to vector<12x128xf32>
    %31 = arith.addf %28, %30 : vector<12x128xf32>
    %cst_11 = arith.constant 0.000000e+00 : f32
    %32 = vector.broadcast %cst_11 : f32 to vector<12x128xf32>
    %33 = arith.maximumf %31, %32 : vector<12x128xf32>
    %34 = vector.extract_strided_slice %33 {offsets = [0, 0], sizes = [4, 128], strides = [1, 1]} : vector<12x128xf32> to vector<4x128xf32>
    %35 = vector.extract_strided_slice %33 {offsets = [1, 0], sizes = [4, 128], strides = [1, 1]} : vector<12x128xf32> to vector<4x128xf32>
    %36 = vector.extract_strided_slice %33 {offsets = [2, 0], sizes = [4, 128], strides = [1, 1]} : vector<12x128xf32> to vector<4x128xf32>
    %37 = tpu.concatenate %34, %35, %36 in 1 : vector<4x128xf32>, vector<4x128xf32>, vector<4x128xf32> -> vector<4x384xf32>
    %38 = vector.extract_strided_slice %33 {offsets = [6, 0], sizes = [4, 128], strides = [1, 1]} : vector<12x128xf32> to vector<4x128xf32>
    %39 = vector.extract_strided_slice %33 {offsets = [7, 0], sizes = [4, 128], strides = [1, 1]} : vector<12x128xf32> to vector<4x128xf32>
    %40 = vector.extract_strided_slice %33 {offsets = [8, 0], sizes = [4, 128], strides = [1, 1]} : vector<12x128xf32> to vector<4x128xf32>
    %41 = tpu.concatenate %38, %39, %40 in 1 : vector<4x128xf32>, vector<4x128xf32>, vector<4x128xf32> -> vector<4x384xf32>
    %42 = tpu.concatenate %37, %41 in 0 : vector<4x384xf32>, vector<4x384xf32> -> vector<8x384xf32>
    %43 = arith.truncf %42 : vector<8x384xf32> to vector<8x384xbf16>
    %c0_12 = arith.constant 0 : index
    %c0_13 = arith.constant 0 : index
    %44 = vector.load %arg6[%c0_12, %c0_13] : memref<384x384xbf16, #tpu.memory_space<vmem>>, vector<384x384xbf16>
    %cst_14 = arith.constant dense<0.000000e+00> : vector<8x384xf32>
    %45 = tpu.matmul %43, %44, %cst_14 {dimension_numbers = #tpu.dot_dimension_numbers<[1], [0], [0], [1], [0, 0, 1, 1], [], []>} : vector<8x384xbf16>, vector<384x384xbf16>, vector<8x384xf32> -> vector<8x384xf32>
    %c0_15 = arith.constant 0 : index
    %c0_16 = arith.constant 0 : index
    %46 = vector.load %arg7[%c0_15, %c0_16] : memref<1x384xf32, #tpu.memory_space<vmem>>, vector<1x384xf32>
    %47 = vector.broadcast %46 : vector<1x384xf32> to vector<8x384xf32>
    %48 = arith.addf %45, %47 : vector<8x384xf32>
    %49 = vector.extract_strided_slice %48 {offsets = [0, 0], sizes = [8, 128], strides = [1, 1]} : vector<8x384xf32> to vector<8x128xf32>
    %50 = vector.extract_strided_slice %48 {offsets = [0, 128], sizes = [8, 128], strides = [1, 1]} : vector<8x384xf32> to vector<8x128xf32>
    %51 = vector.extract_strided_slice %48 {offsets = [0, 256], sizes = [8, 128], strides = [1, 1]} : vector<8x384xf32> to vector<8x128xf32>
    %52 = arith.addf %49, %51 : vector<8x128xf32>
    %53 = arith.negf %50 : vector<8x128xf32>
    %54 = math.exp %53 : vector<8x128xf32>
    %cst_17 = arith.constant 1.000000e+00 : f32
    %55 = vector.broadcast %cst_17 : f32 to vector<8x128xf32>
    %56 = arith.addf %55, %54 : vector<8x128xf32>
    %57 = arith.divf %55, %56 : vector<8x128xf32>
    %58 = arith.mulf %52, %57 : vector<8x128xf32>
    %cst_18 = arith.constant dense<0.000000e+00> : vector<8xf32>
    %59 = vector.multi_reduction <add>, %58, %cst_18 [1] : vector<8x128xf32> to vector<8xf32>
    %60 = vector.shape_cast %59 : vector<8xf32> to vector<8x1xf32>
    %cst_19 = arith.constant 1.280000e+02 : f32
    %61 = vector.broadcast %cst_19 : f32 to vector<8x1xf32>
    %62 = arith.divf %60, %61 : vector<8x1xf32>
    %63 = vector.broadcast %62 : vector<8x1xf32> to vector<8x128xf32>
    %64 = arith.subf %58, %63 : vector<8x128xf32>
    %65 = arith.mulf %64, %64 : vector<8x128xf32>
    %cst_20 = arith.constant dense<0.000000e+00> : vector<8xf32>
    %66 = vector.multi_reduction <add>, %65, %cst_20 [1] : vector<8x128xf32> to vector<8xf32>
    %67 = vector.shape_cast %66 : vector<8xf32> to vector<8x1xf32>
    %cst_21 = arith.constant 1.280000e+02 : f32
    %68 = vector.broadcast %cst_21 : f32 to vector<8x1xf32>
    %69 = arith.divf %67, %68 : vector<8x1xf32>
    %cst_22 = arith.constant 9.99999974E-6 : f32
    %70 = vector.broadcast %cst_22 : f32 to vector<8x1xf32>
    %71 = arith.addf %69, %70 : vector<8x1xf32>
    %72 = math.rsqrt %71 : vector<8x1xf32>
    %73 = vector.broadcast %72 : vector<8x1xf32> to vector<8x128xf32>
    %74 = arith.mulf %64, %73 : vector<8x128xf32>
    %c0_23 = arith.constant 0 : index
    %c0_24 = arith.constant 0 : index
    %75 = vector.load %arg8[%c0_23, %c0_24] : memref<1x128xf32, #tpu.memory_space<vmem>>, vector<1x128xf32>
    %76 = vector.broadcast %75 : vector<1x128xf32> to vector<8x128xf32>
    %77 = arith.mulf %74, %76 : vector<8x128xf32>
    %c0_25 = arith.constant 0 : index
    %c0_26 = arith.constant 0 : index
    %78 = vector.load %arg9[%c0_25, %c0_26] : memref<1x128xf32, #tpu.memory_space<vmem>>, vector<1x128xf32>
    %79 = vector.broadcast %78 : vector<1x128xf32> to vector<8x128xf32>
    %80 = arith.addf %77, %79 : vector<8x128xf32>
    %81 = vector.extract_strided_slice %80 {offsets = [0, 0], sizes = [1, 128], strides = [1, 1]} : vector<8x128xf32> to vector<1x128xf32>
    %82 = vector.extract_strided_slice %80 {offsets = [1, 0], sizes = [1, 128], strides = [1, 1]} : vector<8x128xf32> to vector<1x128xf32>
    %83 = vector.extract_strided_slice %80 {offsets = [2, 0], sizes = [1, 128], strides = [1, 1]} : vector<8x128xf32> to vector<1x128xf32>
    %84 = vector.extract_strided_slice %80 {offsets = [3, 0], sizes = [1, 128], strides = [1, 1]} : vector<8x128xf32> to vector<1x128xf32>
    %85 = tpu.concatenate %81, %82, %83, %84 in 1 : vector<1x128xf32>, vector<1x128xf32>, vector<1x128xf32>, vector<1x128xf32> -> vector<1x512xf32>
    %86 = vector.extract_strided_slice %80 {offsets = [4, 0], sizes = [1, 128], strides = [1, 1]} : vector<8x128xf32> to vector<1x128xf32>
    %87 = vector.extract_strided_slice %80 {offsets = [5, 0], sizes = [1, 128], strides = [1, 1]} : vector<8x128xf32> to vector<1x128xf32>
    %88 = vector.extract_strided_slice %80 {offsets = [6, 0], sizes = [1, 128], strides = [1, 1]} : vector<8x128xf32> to vector<1x128xf32>
    %89 = vector.extract_strided_slice %80 {offsets = [7, 0], sizes = [1, 128], strides = [1, 1]} : vector<8x128xf32> to vector<1x128xf32>
    %90 = tpu.concatenate %86, %87, %88, %89 in 1 : vector<1x128xf32>, vector<1x128xf32>, vector<1x128xf32>, vector<1x128xf32> -> vector<1x512xf32>
    %91 = tpu.concatenate %85, %90 in 0 : vector<1x512xf32>, vector<1x512xf32> -> vector<2x512xf32>
    %92 = arith.truncf %91 : vector<2x512xf32> to vector<2x512xbf16>
    %c0_27 = arith.constant 0 : index
    %c0_28 = arith.constant 0 : index
    %93 = vector.load %arg10[%c0_27, %c0_28] : memref<512x384xbf16, #tpu.memory_space<vmem>>, vector<512x384xbf16>
    %cst_29 = arith.constant dense<0.000000e+00> : vector<2x384xf32>
    %94 = tpu.matmul %92, %93, %cst_29 {dimension_numbers = #tpu.dot_dimension_numbers<[1], [0], [0], [1], [0, 0, 1, 1], [], []>} : vector<2x512xbf16>, vector<512x384xbf16>, vector<2x384xf32> -> vector<2x384xf32>
    %c0_30 = arith.constant 0 : index
    %c0_31 = arith.constant 0 : index
    %95 = vector.load %arg11[%c0_30, %c0_31] : memref<1x384xf32, #tpu.memory_space<vmem>>, vector<1x384xf32>
    %96 = vector.broadcast %95 : vector<1x384xf32> to vector<2x384xf32>
    %97 = arith.addf %94, %96 : vector<2x384xf32>
    %98 = vector.extract_strided_slice %97 {offsets = [0, 0], sizes = [2, 128], strides = [1, 1]} : vector<2x384xf32> to vector<2x128xf32>
    %99 = vector.extract_strided_slice %97 {offsets = [0, 128], sizes = [2, 128], strides = [1, 1]} : vector<2x384xf32> to vector<2x128xf32>
    %100 = vector.extract_strided_slice %97 {offsets = [0, 256], sizes = [2, 128], strides = [1, 1]} : vector<2x384xf32> to vector<2x128xf32>
    %101 = arith.addf %98, %100 : vector<2x128xf32>
    %102 = arith.negf %99 : vector<2x128xf32>
    %103 = math.exp %102 : vector<2x128xf32>
    %cst_32 = arith.constant 1.000000e+00 : f32
    %104 = vector.broadcast %cst_32 : f32 to vector<2x128xf32>
    %105 = arith.addf %104, %103 : vector<2x128xf32>
    %106 = arith.divf %104, %105 : vector<2x128xf32>
    %107 = arith.mulf %101, %106 : vector<2x128xf32>
    %cst_33 = arith.constant dense<0.000000e+00> : vector<2xf32>
    %108 = vector.multi_reduction <add>, %107, %cst_33 [1] : vector<2x128xf32> to vector<2xf32>
    %109 = vector.shape_cast %108 : vector<2xf32> to vector<2x1xf32>
    %cst_34 = arith.constant 1.280000e+02 : f32
    %110 = vector.broadcast %cst_34 : f32 to vector<2x1xf32>
    %111 = arith.divf %109, %110 : vector<2x1xf32>
    %112 = vector.broadcast %111 : vector<2x1xf32> to vector<2x128xf32>
    %113 = arith.subf %107, %112 : vector<2x128xf32>
    %114 = arith.mulf %113, %113 : vector<2x128xf32>
    %cst_35 = arith.constant dense<0.000000e+00> : vector<2xf32>
    %115 = vector.multi_reduction <add>, %114, %cst_35 [1] : vector<2x128xf32> to vector<2xf32>
    %116 = vector.shape_cast %115 : vector<2xf32> to vector<2x1xf32>
    %cst_36 = arith.constant 1.280000e+02 : f32
    %117 = vector.broadcast %cst_36 : f32 to vector<2x1xf32>
    %118 = arith.divf %116, %117 : vector<2x1xf32>
    %cst_37 = arith.constant 9.99999974E-6 : f32
    %119 = vector.broadcast %cst_37 : f32 to vector<2x1xf32>
    %120 = arith.addf %118, %119 : vector<2x1xf32>
    %121 = math.rsqrt %120 : vector<2x1xf32>
    %122 = vector.broadcast %121 : vector<2x1xf32> to vector<2x128xf32>
    %123 = arith.mulf %113, %122 : vector<2x128xf32>
    %c0_38 = arith.constant 0 : index
    %c0_39 = arith.constant 0 : index
    %124 = vector.load %arg12[%c0_38, %c0_39] : memref<1x128xf32, #tpu.memory_space<vmem>>, vector<1x128xf32>
    %125 = vector.broadcast %124 : vector<1x128xf32> to vector<2x128xf32>
    %126 = arith.mulf %123, %125 : vector<2x128xf32>
    %c0_40 = arith.constant 0 : index
    %c0_41 = arith.constant 0 : index
    %127 = vector.load %arg13[%c0_40, %c0_41] : memref<1x128xf32, #tpu.memory_space<vmem>>, vector<1x128xf32>
    %128 = vector.broadcast %127 : vector<1x128xf32> to vector<2x128xf32>
    %129 = arith.addf %126, %128 : vector<2x128xf32>
    %130 = arith.truncf %129 : vector<2x128xf32> to vector<2x128xbf16>
    %c0_42 = arith.constant 0 : index
    %c0_43 = arith.constant 0 : index
    %131 = vector.load %arg14[%c0_42, %c0_43] : memref<128x128xbf16, #tpu.memory_space<vmem>>, vector<128x128xbf16>
    %cst_44 = arith.constant dense<0.000000e+00> : vector<2x128xf32>
    %132 = tpu.matmul %130, %131, %cst_44 {dimension_numbers = #tpu.dot_dimension_numbers<[1], [0], [0], [1], [0, 0, 1, 1], [], []>} : vector<2x128xbf16>, vector<128x128xbf16>, vector<2x128xf32> -> vector<2x128xf32>
    %c0_45 = arith.constant 0 : index
    %c0_46 = arith.constant 0 : index
    %133 = vector.load %arg15[%c0_45, %c0_46] : memref<1x128xf32, #tpu.memory_space<vmem>>, vector<1x128xf32>
    %134 = vector.broadcast %133 : vector<1x128xf32> to vector<2x128xf32>
    %135 = arith.addf %132, %134 : vector<2x128xf32>
    %cst_47 = arith.constant 0.000000e+00 : f32
    %136 = vector.broadcast %cst_47 : f32 to vector<2x128xf32>
    %137 = arith.maximumf %135, %136 : vector<2x128xf32>
    %138 = vector.extract_strided_slice %137 {offsets = [0, 0], sizes = [1, 128], strides = [1, 1]} : vector<2x128xf32> to vector<1x128xf32>
    %cst_48 = arith.constant dense<0.000000e+00> : vector<128xf32>
    %139 = vector.multi_reduction <add>, %138, %cst_48 [0] : vector<1x128xf32> to vector<128xf32>
    %140 = vector.shape_cast %139 : vector<128xf32> to vector<1x128xf32>
    %cst_49 = arith.constant 1.000000e+00 : f32
    %141 = vector.broadcast %cst_49 : f32 to vector<1x128xf32>
    %142 = arith.divf %140, %141 : vector<1x128xf32>
    %143 = vector.extract_strided_slice %137 {offsets = [1, 0], sizes = [1, 128], strides = [1, 1]} : vector<2x128xf32> to vector<1x128xf32>
    %cst_50 = arith.constant dense<0.000000e+00> : vector<128xf32>
    %144 = vector.multi_reduction <add>, %143, %cst_50 [0] : vector<1x128xf32> to vector<128xf32>
    %145 = vector.shape_cast %144 : vector<128xf32> to vector<1x128xf32>
    %cst_51 = arith.constant 1.000000e+00 : f32
    %146 = vector.broadcast %cst_51 : f32 to vector<1x128xf32>
    %147 = arith.divf %145, %146 : vector<1x128xf32>
    %148 = tpu.concatenate %142, %147 in 0 : vector<1x128xf32>, vector<1x128xf32> -> vector<2x128xf32>
    %149 = arith.truncf %148 : vector<2x128xf32> to vector<2x128xbf16>
    %c0_52 = arith.constant 0 : index
    %c0_53 = arith.constant 0 : index
    %150 = vector.load %arg16[%c0_52, %c0_53] : memref<128x1xbf16, #tpu.memory_space<vmem>>, vector<128x1xbf16>
    %cst_54 = arith.constant dense<0.000000e+00> : vector<2x1xf32>
    %151 = tpu.matmul %149, %150, %cst_54 {dimension_numbers = #tpu.dot_dimension_numbers<[1], [0], [0], [1], [0, 0, 1, 1], [], []>} : vector<2x128xbf16>, vector<128x1xbf16>, vector<2x1xf32> -> vector<2x1xf32>
    %c0_55 = arith.constant 0 : index
    %c0_56 = arith.constant 0 : index
    %152 = vector.load %arg17[%c0_55, %c0_56] : memref<1x1xf32, #tpu.memory_space<vmem>>, vector<1x1xf32>
    %153 = vector.broadcast %152 : vector<1x1xf32> to vector<2x1xf32>
    %154 = arith.addf %151, %153 : vector<2x1xf32>
    %c0_57 = arith.constant 0 : index
    %c0_58 = arith.constant 0 : index
    %c0_59 = arith.constant 0 : index
    %155 = vector.load %arg18[%c0_57, %c0_58, %c0_59] : memref<1x2x1xf32, #tpu.memory_space<vmem>>, vector<1x2x1xf32>
    %156 = vector.shape_cast %155 : vector<1x2x1xf32> to vector<2x1xf32>
    %157 = vector.shape_cast %154 : vector<2x1xf32> to vector<1x2x1xf32>
    tpu.vector_store %arg18[%c0_57, %c0_58, %c0_59], %157 {strides = array<i32>} : memref<1x2x1xf32, #tpu.memory_space<vmem>>, vector<1x2x1xf32>,
    return
  }
  func.func @transform_0(%arg0: i32) -> (i32, i32) {
    %c0_i32 = arith.constant 0 : i32
    %c0_i32_0 = arith.constant 0 : i32
    return %arg0, %c0_i32 : i32, i32
  }
  func.func @transform_1(%arg0: i32) -> (i32, i32) {
    %c0_i32 = arith.constant 0 : i32
    %c0_i32_0 = arith.constant 0 : i32
    %c0_i32_1 = arith.constant 0 : i32
    return %c0_i32, %c0_i32_0 : i32, i32
  }
  func.func @transform_2(%arg0: i32) -> (i32, i32) {
    %c0_i32 = arith.constant 0 : i32
    %c0_i32_0 = arith.constant 0 : i32
    %c0_i32_1 = arith.constant 0 : i32
    return %c0_i32, %c0_i32_0 : i32, i32
  }
  func.func @transform_3(%arg0: i32) -> (i32, i32) {
    %c0_i32 = arith.constant 0 : i32
    %c0_i32_0 = arith.constant 0 : i32
    %c0_i32_1 = arith.constant 0 : i32
    return %c0_i32, %c0_i32_0 : i32, i32
  }
  func.func @transform_4(%arg0: i32) -> (i32, i32) {
    %c0_i32 = arith.constant 0 : i32
    %c0_i32_0 = arith.constant 0 : i32
    %c0_i32_1 = arith.constant 0 : i32
    return %c0_i32, %c0_i32_0 : i32, i32
  }
  func.func @transform_5(%arg0: i32) -> (i32, i32) {
    %c0_i32 = arith.constant 0 : i32
    %c0_i32_0 = arith.constant 0 : i32
    %c0_i32_1 = arith.constant 0 : i32
    return %c0_i32, %c0_i32_0 : i32, i32
  }
  func.func @transform_6(%arg0: i32) -> (i32, i32) {
    %c0_i32 = arith.constant 0 : i32
    %c0_i32_0 = arith.constant 0 : i32
    %c0_i32_1 = arith.constant 0 : i32
    return %c0_i32, %c0_i32_0 : i32, i32
  }
  func.func @transform_7(%arg0: i32) -> (i32, i32) {
    %c0_i32 = arith.constant 0 : i32
    %c0_i32_0 = arith.constant 0 : i32
    %c0_i32_1 = arith.constant 0 : i32
    return %c0_i32, %c0_i32_0 : i32, i32
  }
  func.func @transform_8(%arg0: i32) -> (i32, i32) {
    %c0_i32 = arith.constant 0 : i32
    %c0_i32_0 = arith.constant 0 : i32
    %c0_i32_1 = arith.constant 0 : i32
    return %c0_i32, %c0_i32_0 : i32, i32
  }
  func.func @transform_9(%arg0: i32) -> (i32, i32) {
    %c0_i32 = arith.constant 0 : i32
    %c0_i32_0 = arith.constant 0 : i32
    %c0_i32_1 = arith.constant 0 : i32
    return %c0_i32, %c0_i32_0 : i32, i32
  }
  func.func @transform_10(%arg0: i32) -> (i32, i32) {
    %c0_i32 = arith.constant 0 : i32
    %c0_i32_0 = arith.constant 0 : i32
    %c0_i32_1 = arith.constant 0 : i32
    return %c0_i32, %c0_i32_0 : i32, i32
  }
  func.func @transform_11(%arg0: i32) -> (i32, i32) {
    %c0_i32 = arith.constant 0 : i32
    %c0_i32_0 = arith.constant 0 : i32
    %c0_i32_1 = arith.constant 0 : i32
    return %c0_i32, %c0_i32_0 : i32, i32
  }
  func.func @transform_12(%arg0: i32) -> (i32, i32) {
    %c0_i32 = arith.constant 0 : i32
    %c0_i32_0 = arith.constant 0 : i32
    %c0_i32_1 = arith.constant 0 : i32
    return %c0_i32, %c0_i32_0 : i32, i32
  }
  func.func @transform_13(%arg0: i32) -> (i32, i32) {
    %c0_i32 = arith.constant 0 : i32
    %c0_i32_0 = arith.constant 0 : i32
    %c0_i32_1 = arith.constant 0 : i32
    return %c0_i32, %c0_i32_0 : i32, i32
  }
  func.func @transform_14(%arg0: i32) -> (i32, i32) {
    %c0_i32 = arith.constant 0 : i32
    %c0_i32_0 = arith.constant 0 : i32
    %c0_i32_1 = arith.constant 0 : i32
    return %c0_i32, %c0_i32_0 : i32, i32
  }
  func.func @transform_15(%arg0: i32) -> (i32, i32) {
    %c0_i32 = arith.constant 0 : i32
    %c0_i32_0 = arith.constant 0 : i32
    %c0_i32_1 = arith.constant 0 : i32
    return %c0_i32, %c0_i32_0 : i32, i32
  }
  func.func @transform_16(%arg0: i32) -> (i32, i32) {
    %c0_i32 = arith.constant 0 : i32
    %c0_i32_0 = arith.constant 0 : i32
    %c0_i32_1 = arith.constant 0 : i32
    return %c0_i32, %c0_i32_0 : i32, i32
  }
  func.func @transform_17(%arg0: i32) -> (i32, i32, i32) {
    %c0_i32 = arith.constant 0 : i32
    %c0_i32_0 = arith.constant 0 : i32
    %c0_i32_1 = arith.constant 0 : i32
    return %arg0, %c0_i32, %c0_i32_0 : i32, i32, i32
  }
}

</mosaic_0001>

<llo_original>
// kernel: tpu_custom_call.1
$region0: #{tpu_custom_call.1}
  #allocation0 [shape = 'u32[]', space=smem, size = 0x4, offset = 0x4, fixed_abs, tag = 'smem constant byte address 0x4 - core index']
  #allocation1 [shape = 'u32[144,128]{1,0:T(1,128)}', space=vmem, size = 0x12000, scoped, tag = 'internal scratch']
  #allocation2 [shape = 'f32[1,1]{1,0:T(1,128)S(1)}', space=vmem, size = 0x200, scoped, tag = 'scoped memory for tpu_custom_call.1']
  %s0 = inlined_call_operand.hbm [shape: f32[16,32], index: 0, kind: input, shape index: {}]
  %s1 = inlined_call_operand.hbm [shape: bf16[96,384], index: 1, kind: input, shape index: {}]
  %s2 = inlined_call_operand.vmem [shape: f32[1,384], index: 2, kind: input, shape index: {}]
  %s3 = inlined_call_operand.vmem [shape: bf16[128,128], index: 3, kind: input, shape index: {}]
  %s4 = inlined_call_operand.vmem [shape: f32[1,128], index: 4, kind: input, shape index: {}]
  %s5 = inlined_call_operand.hbm [shape: bf16[384,384], index: 5, kind: input, shape index: {}]
  %s6 = inlined_call_operand.vmem [shape: f32[1,384], index: 6, kind: input, shape index: {}]
  %s7 = inlined_call_operand.vmem [shape: f32[1,128], index: 7, kind: input, shape index: {}]
  %s8 = inlined_call_operand.vmem [shape: f32[1,128], index: 8, kind: input, shape index: {}]
  %s9 = inlined_call_operand.hbm [shape: bf16[512,384], index: 9, kind: input, shape index: {}]
  %s10 = inlined_call_operand.vmem [shape: f32[1,384], index: 10, kind: input, shape index: {}]
  %s11 = inlined_call_operand.vmem [shape: f32[1,128], index: 11, kind: input, shape index: {}]
  %s12 = inlined_call_operand.vmem [shape: f32[1,128], index: 12, kind: input, shape index: {}]
  %s13 = inlined_call_operand.hbm [shape: bf16[128,128], index: 13, kind: input, shape index: {}]
  %s14 = inlined_call_operand.vmem [shape: f32[1,128], index: 14, kind: input, shape index: {}]
  %s15 = inlined_call_operand.vmem [shape: bf16[128,1], index: 15, kind: input, shape index: {}]
  %s16 = inlined_call_operand.<no memory space> [shape: f32[1,1], index: 16, kind: input, shape index: {}]
  %s17 = inlined_call_operand.vmem [shape: f32[1,2,1], index: 17, kind: output, shape index: {}]
  %s18 = sld [smem:[#allocation0]]
  $region98: #{tpu_custom_call.1} parent=0
    _
  %s20 = ssub.s32 1, %s18
  %s21 = scalar_select 0, %s20, %s18
  %v22 = vstv %s16
  %23 = vst [vmem:[#allocation2] sm:$0x1] %v22
  $region1: #{tpu_custom_call.1} parent=0
    #allocation3 [shape = 'u8[8192]{0}', space=vmem, size = 0x2000, scoped, tag = 'input window, operand 0, single buffered']
    #allocation4 [shape = 's32[1]{0}', space=sflag, size = 0x4, scoped, tag = 'scoped memory for tpu_custom_call.1']
    #allocation5 [shape = 'u8[73728]{0}', space=vmem, size = 0x12000, scoped, tag = 'input window, operand 1, single buffered']
    #allocation6 [shape = 's32[1]{0}', space=sflag, size = 0x4, scoped, tag = 'scoped memory for tpu_custom_call.1']
    #allocation7 [shape = 'u8[294912]{0}', space=vmem, size = 0x48000, scoped, tag = 'input window, operand 5, single buffered']
    #allocation8 [shape = 'u8[393216]{0}', space=vmem, size = 0x60000, scoped, tag = 'input window, operand 9, single buffered']
    #allocation9 [shape = 's32[1]{0}', space=sflag, size = 0x4, scoped, tag = 'scoped memory for tpu_custom_call.1']
    #allocation10 [shape = 'u8[32768]{0}', space=vmem, size = 0x8000, scoped, tag = 'input window, operand 13, single buffered']
    %24 = vsyncpa [#allocation4], 0
    %25 = vsyncpa [#allocation6], 0
    %26 = vsyncpa [#allocation9], 0
    // Predicated region
    $region2: #{tpu_custom_call.1} parent=1 // pred_check
      _
    $region3: #{tpu_custom_call.1} parent=1 // pred_check_branch
      %28 = sbr.rel (0) target = $region5
    $region4: #{tpu_custom_call.1} parent=1 // pred_region
      %s30 = ssub.s32 256, 256
      %31 = vsyncadd [#allocation4], %s30
      %s32 = sshll.u32 [#allocation3], 4
      %s33 = int_to_ptr.vmem [resolvable:$true] %s32
      %38 = dma.hbm_to_vmem [thread:$0]  %s0, 256, %s33, [#allocation4], 128, 128, 8
    $region5: #{tpu_custom_call.1} parent=1 // pred_fallthru
      _
    // Predicated region
    $region6: #{tpu_custom_call.1} parent=1 // pred_check
      _
    $region7: #{tpu_custom_call.1} parent=1 // pred_check_branch
      %40 = sbr.rel (0) target = $region9
    $region8: #{tpu_custom_call.1} parent=1 // pred_region
      %s42 = ssub.s32 2304, 2304
      %43 = vsyncadd [#allocation6], %s42
      %s44 = sshll.u32 [#allocation5], 4
      %s45 = int_to_ptr.vmem [resolvable:$true] %s44
      %50 = dma.hbm_to_vmem [thread:$0]  %s1, 2304, %s45, [#allocation6], 192, 192, 12
    $region9: #{tpu_custom_call.1} parent=1 // pred_fallthru
      _
    // Predicated region
    $region10: #{tpu_custom_call.1} parent=1 // pred_check
      _
    $region11: #{tpu_custom_call.1} parent=1 // pred_check_branch
      %52 = sbr.rel (0) target = $region13
    $region12: #{tpu_custom_call.1} parent=1 // pred_region
      _
    $region13: #{tpu_custom_call.1} parent=1 // pred_fallthru
      _
    // Predicated region
    $region14: #{tpu_custom_call.1} parent=1 // pred_check
      _
    $region15: #{tpu_custom_call.1} parent=1 // pred_check_branch
      %54 = sbr.rel (0) target = $region17
    $region16: #{tpu_custom_call.1} parent=1 // pred_region
      _
    $region17: #{tpu_custom_call.1} parent=1 // pred_fallthru
      _
    // Predicated region
    $region18: #{tpu_custom_call.1} parent=1 // pred_check
      _
    $region19: #{tpu_custom_call.1} parent=1 // pred_check_branch
      %56 = sbr.rel (0) target = $region21
    $region20: #{tpu_custom_call.1} parent=1 // pred_region
      _
    $region21: #{tpu_custom_call.1} parent=1 // pred_fallthru
      _
    // Predicated region
    $region22: #{tpu_custom_call.1} parent=1 // pred_check
      _
    $region23: #{tpu_custom_call.1} parent=1 // pred_check_branch
      %58 = sbr.rel (0) target = $region25
    $region24: #{tpu_custom_call.1} parent=1 // pred_region
      %s60 = ssub.s32 9216, 9216
      %61 = vsyncadd [#allocation6], %s60
      %s62 = sshll.u32 [#allocation7], 4
      %s63 = int_to_ptr.vmem [resolvable:$true] %s62
      %68 = dma.hbm_to_vmem [thread:$0]  %s5, 9216, %s63, [#allocation6], 192, 192, 12
    $region25: #{tpu_custom_call.1} parent=1 // pred_fallthru
      _
    // Predicated region
    $region26: #{tpu_custom_call.1} parent=1 // pred_check
      _
    $region27: #{tpu_custom_call.1} parent=1 // pred_check_branch
      %70 = sbr.rel (0) target = $region29
    $region28: #{tpu_custom_call.1} parent=1 // pred_region
      _
    $region29: #{tpu_custom_call.1} parent=1 // pred_fallthru
      _
    // Predicated region
    $region30: #{tpu_custom_call.1} parent=1 // pred_check
      _
    $region31: #{tpu_custom_call.1} parent=1 // pred_check_branch
      %72 = sbr.rel (0) target = $region33
    $region32: #{tpu_custom_call.1} parent=1 // pred_region
      _
    $region33: #{tpu_custom_call.1} parent=1 // pred_fallthru
      _
    // Predicated region
    $region34: #{tpu_custom_call.1} parent=1 // pred_check
      _
    $region35: #{tpu_custom_call.1} parent=1 // pred_check_branch
      %74 = sbr.rel (0) target = $region37
    $region36: #{tpu_custom_call.1} parent=1 // pred_region
      _
    $region37: #{tpu_custom_call.1} parent=1 // pred_fallthru
      _
    // Predicated region
    $region38: #{tpu_custom_call.1} parent=1 // pred_check
      _
    $region39: #{tpu_custom_call.1} parent=1 // pred_check_branch
      %76 = sbr.rel (0) target = $region41
    $region40: #{tpu_custom_call.1} parent=1 // pred_region
      %s78 = ssub.s32 12288, 12288
      %79 = vsyncadd [#allocation9], %s78
      %s80 = sshll.u32 [#allocation8], 4
      %s81 = int_to_ptr.vmem [resolvable:$true] %s80
      %86 = dma.hbm_to_vmem [thread:$0]  %s9, 12288, %s81, [#allocation9], 192, 192, 12
    $region41: #{tpu_custom_call.1} parent=1 // pred_fallthru
      _
    // Predicated region
    $region42: #{tpu_custom_call.1} parent=1 // pred_check
      _
    $region43: #{tpu_custom_call.1} parent=1 // pred_check_branch
      %88 = sbr.rel (0) target = $region45
    $region44: #{tpu_custom_call.1} parent=1 // pred_region
      _
    $region45: #{tpu_custom_call.1} parent=1 // pred_fallthru
      _
    // Predicated region
    $region46: #{tpu_custom_call.1} parent=1 // pred_check
      _
    $region47: #{tpu_custom_call.1} parent=1 // pred_check_branch
      %90 = sbr.rel (0) target = $region49
    $region48: #{tpu_custom_call.1} parent=1 // pred_region
      _
    $region49: #{tpu_custom_call.1} parent=1 // pred_fallthru
      _
    // Predicated region
    $region50: #{tpu_custom_call.1} parent=1 // pred_check
      _
    $region51: #{tpu_custom_call.1} parent=1 // pred_check_branch
      %92 = sbr.rel (0) target = $region53
    $region52: #{tpu_custom_call.1} parent=1 // pred_region
      _
    $region53: #{tpu_custom_call.1} parent=1 // pred_fallthru
      _
    // Predicated region
    $region54: #{tpu_custom_call.1} parent=1 // pred_check
      _
    $region55: #{tpu_custom_call.1} parent=1 // pred_check_branch
      %94 = sbr.rel (0) target = $region57
    $region56: #{tpu_custom_call.1} parent=1 // pred_region
      %s96 = ssub.s32 1024, 1024
      %97 = vsyncadd [#allocation9], %s96
      %s98 = sshll.u32 [#allocation10], 4
      %s99 = int_to_ptr.vmem [resolvable:$true] %s98
      %104 = dma.hbm_to_vmem [thread:$0]  %s13, 1024, %s99, [#allocation9], 64, 64, 4
    $region57: #{tpu_custom_call.1} parent=1 // pred_fallthru
      _
    // Predicated region
    $region58: #{tpu_custom_call.1} parent=1 // pred_check
      _
    $region59: #{tpu_custom_call.1} parent=1 // pred_check_branch
      %106 = sbr.rel (0) target = $region61
    $region60: #{tpu_custom_call.1} parent=1 // pred_region
      _
    $region61: #{tpu_custom_call.1} parent=1 // pred_fallthru
      _
    // Predicated region
    $region62: #{tpu_custom_call.1} parent=1 // pred_check
      _
    $region63: #{tpu_custom_call.1} parent=1 // pred_check_branch
      %108 = sbr.rel (0) target = $region65
    $region64: #{tpu_custom_call.1} parent=1 // pred_region
      _
    $region65: #{tpu_custom_call.1} parent=1 // pred_fallthru
      _
    // Predicated region
    $region66: #{tpu_custom_call.1} parent=1 // pred_check
      _
    $region67: #{tpu_custom_call.1} parent=1 // pred_check_branch
      %110 = sbr.rel (0) target = $region69
    $region68: #{tpu_custom_call.1} parent=1 // pred_region
      _
    $region69: #{tpu_custom_call.1} parent=1 // pred_fallthru
      _
    // Predicated region
    $region70: #{tpu_custom_call.1} parent=1 // pred_check
      _
    $region71: #{tpu_custom_call.1} parent=1 // pred_check_branch
      %112 = sbr.rel (0) target = $region73
    $region72: #{tpu_custom_call.1} parent=1 // pred_region
      %113 = dma.done [#allocation4], 256
    $region73: #{tpu_custom_call.1} parent=1 // pred_fallthru
      _
    // Predicated region
    $region74: #{tpu_custom_call.1} parent=1 // pred_check
      _
    $region75: #{tpu_custom_call.1} parent=1 // pred_check_branch
      %115 = sbr.rel (0) target = $region77
    $region76: #{tpu_custom_call.1} parent=1 // pred_region
      %116 = dma.done [#allocation6], 2304
    $region77: #{tpu_custom_call.1} parent=1 // pred_fallthru
      _
    // Predicated region
    $region78: #{tpu_custom_call.1} parent=1 // pred_check
      _
    $region79: #{tpu_custom_call.1} parent=1 // pred_check_branch
      %118 = sbr.rel (0) target = $region81
    $region80: #{tpu_custom_call.1} parent=1 // pred_region
      %119 = dma.done [#allocation6], 9216
    $region81: #{tpu_custom_call.1} parent=1 // pred_fallthru
      _
    // Predicated region
    $region82: #{tpu_custom_call.1} parent=1 // pred_check
      _
    $region83: #{tpu_custom_call.1} parent=1 // pred_check_branch
      %121 = sbr.rel (0) target = $region85
    $region84: #{tpu_custom_call.1} parent=1 // pred_region
      %122 = dma.done [#allocation9], 12288
    $region85: #{tpu_custom_call.1} parent=1 // pred_fallthru
      _
    // Predicated region
    $region86: #{tpu_custom_call.1} parent=1 // pred_check
      _
    $region87: #{tpu_custom_call.1} parent=1 // pred_check_branch
      %124 = sbr.rel (0) target = $region89
    $region88: #{tpu_custom_call.1} parent=1 // pred_region
      %125 = dma.done [#allocation9], 1024
    $region89: #{tpu_custom_call.1} parent=1 // pred_fallthru
      _
    %v127 = vld [vmem:[#allocation3] sm:$0xff]
    %v128 = vld [vmem:[#allocation3 + $0x8] sm:$0xff]
    %v130 = vrot.slane %v127, 1
    %131 = vrot.lane.b32.xlu0 %v130, 32
    %v132 = vpop.permute.xlu0 %131
    %v134 = vrot.slane %v127, 2
    %135 = vrot.lane.b32.xlu0 %v134, 64
    %v136 = vpop.permute.xlu0 %135
    %vm138 = vcmask 261120
    %v139 = vsel %vm138, %v127, %v132
    %vm140 = vcmask 523264
    %v141 = vsel %vm140, %v139, %v136
    %v143 = vrot.slane %v128, 1
    %144 = vrot.lane.b32.xlu0 %v143, 32
    %v145 = vpop.permute.xlu0 %144
    %v147 = vrot.slane %v128, 2
    %148 = vrot.lane.b32.xlu0 %v147, 64
    %v149 = vpop.permute.xlu0 %148
    %v151 = vsel %vm138, %v128, %v145
    %v152 = vsel %vm140, %v151, %v149
    %v154 = vrot.slane %v152, 2
    %vm156 = vcmask 1045504
    %v157 = vsel %vm156, %v141, %v154
    %v158 = vpack.c.bf16 %v154, %v157
    %v159 = vld [vmem:[#allocation5] sm:$0xff]
    %v160 = vld [vmem:[#allocation5 + $0x8] sm:$0xf]
    %v161 = vld [vmem:[#allocation5 + $0xc] sm:$0xff]
    %v162 = vld [vmem:[#allocation5 + $0x14] sm:$0xf]
    %v163 = vld [vmem:[#allocation5 + $0x18] sm:$0xff]
    %v164 = vld [vmem:[#allocation5 + $0x20] sm:$0xf]
    %v165 = vld [vmem:[#allocation5 + $0x24] sm:$0xff]
    %v166 = vld [vmem:[#allocation5 + $0x2c] sm:$0xf]
    %v167 = vld [vmem:[#allocation5 + $0x30] sm:$0xff]
    %v168 = vld [vmem:[#allocation5 + $0x38] sm:$0xf]
    %v169 = vld [vmem:[#allocation5 + $0x3c] sm:$0xff]
    %v170 = vld [vmem:[#allocation5 + $0x44] sm:$0xf]
    %v171 = vld [vmem:[#allocation5 + $0x48] sm:$0xff]
    %v172 = vld [vmem:[#allocation5 + $0x50] sm:$0xf]
    %v173 = vld [vmem:[#allocation5 + $0x54] sm:$0xff]
    %v174 = vld [vmem:[#allocation5 + $0x5c] sm:$0xf]
    %v175 = vld [vmem:[#allocation5 + $0x60] sm:$0xff]
    %v176 = vld [vmem:[#allocation5 + $0x68] sm:$0xf]
    %v177 = vld [vmem:[#allocation5 + $0x6c] sm:$0xff]
    %v178 = vld [vmem:[#allocation5 + $0x74] sm:$0xf]
    %v179 = vld [vmem:[#allocation5 + $0x78] sm:$0xff]
    %v180 = vld [vmem:[#allocation5 + $0x80] sm:$0xf]
    %v181 = vld [vmem:[#allocation5 + $0x84] sm:$0xff]
    %v182 = vld [vmem:[#allocation5 + $0x8c] sm:$0xf]
    %v183 = vld [vmem:[%s2] sm:$0x7]
    %v185 = vlaneseq
    %v186 = vshrl.u32 %v185, 7
    %v187 = vsub.s32 0, %v186
    %v188 = vrot.slane %v183, %v187
    %v189 = vlaneseq
    %v190 = vshrl.u32 %v189, 7
    %v191 = vsub.s32 1, %v190
    %v192 = vrot.slane %v183, %v191
    %v193 = vlaneseq
    %v194 = vshrl.u32 %v193, 7
    %v195 = vsub.s32 2, %v194
    %v196 = vrot.slane %v183, %v195
    %v224 = vunpack.c.l.b16 %v159
    %v225 = vunpack.c.h.b16 %v159
    %v226 = vunpack.c.l.b16 %v160
    %v227 = vunpack.c.l.b16 %v161
    %v228 = vunpack.c.h.b16 %v161
    %v229 = vunpack.c.l.b16 %v162
    %v230 = vunpack.c.l.b16 %v163
    %v231 = vunpack.c.h.b16 %v163
    %v232 = vunpack.c.l.b16 %v164
    %v233 = vunpack.c.l.b16 %v165
    %v234 = vunpack.c.h.b16 %v165
    %v235 = vunpack.c.l.b16 %v166
    %v236 = vunpack.c.l.b16 %v167
    %v237 = vunpack.c.h.b16 %v167
    %v238 = vunpack.c.l.b16 %v168
    %v239 = vunpack.c.l.b16 %v169
    %v240 = vunpack.c.h.b16 %v169
    %v241 = vunpack.c.l.b16 %v170
    %v242 = vunpack.c.l.b16 %v171
    %v243 = vunpack.c.h.b16 %v171
    %v244 = vunpack.c.l.b16 %v172
    %v245 = vunpack.c.l.b16 %v173
    %v246 = vunpack.c.h.b16 %v173
    %v247 = vunpack.c.l.b16 %v174
    %v248 = vunpack.c.l.b16 %v175
    %v249 = vunpack.c.h.b16 %v175
    %v250 = vunpack.c.l.b16 %v176
    %v251 = vunpack.c.l.b16 %v177
    %v252 = vunpack.c.h.b16 %v177
    %v253 = vunpack.c.l.b16 %v178
    %v254 = vunpack.c.l.b16 %v179
    %v255 = vunpack.c.h.b16 %v179
    %v256 = vunpack.c.l.b16 %v180
    %v257 = vunpack.c.l.b16 %v181
    %v258 = vunpack.c.h.b16 %v181
    %v259 = vunpack.c.l.b16 %v182
    %v260 = vpack.c.b16 %v227, %v224
    %v261 = vpack.c.b16 %v228, %v225
    %v262 = vpack.c.b16 %v229, %v226
    %v263 = vpack.c.b16 %v233, %v230
    %v264 = vpack.c.b16 %v234, %v231
    %v265 = vpack.c.b16 %v235, %v232
    %v266 = vpack.c.b16 %v239, %v236
    %v267 = vpack.c.b16 %v240, %v237
    %v268 = vpack.c.b16 %v241, %v238
    %v269 = vpack.c.b16 %v245, %v242
    %v270 = vpack.c.b16 %v246, %v243
    %v271 = vpack.c.b16 %v247, %v244
    %v272 = vpack.c.b16 %v251, %v248
    %v273 = vpack.c.b16 %v252, %v249
    %v274 = vpack.c.b16 %v253, %v250
    %v275 = vpack.c.b16 %v257, %v254
    %v276 = vpack.c.b16 %v258, %v255
    %v277 = vpack.c.b16 %v259, %v256
    %vm296 = vcmask 785408
    %v298 = vsel %vm296, %v158, 0
    %300 = vmatprep.subr.bf16.mxu0 0
    %301 = vmatpush1.bf16.msra.mxu0 0
    %302 = vmatprep.subr.bf16.mxu0 0
    %303 = vmatpush1.bf16.msra.mxu0 0
    %304 = vmatprep.subr.bf16.mxu0 %v276
    %305 = vmatpush1.bf16.msra.mxu0 %v275
    %306 = vmatprep.subr.bf16.mxu0 %v273
    %307 = vmatpush1.bf16.msra.mxu0 %v272
    %308 = vmatprep.subr.bf16.mxu0 %v270
    %309 = vmatpush1.bf16.msra.mxu0 %v269
    %310 = vmatprep.subr.bf16.mxu0 %v267
    %311 = vmatpush1.bf16.msra.mxu0 %v266
    %312 = vmatprep.subr.bf16.mxu0 %v264
    %313 = vmatpush1.bf16.msra.mxu0 %v263
    %314 = vmatprep.subr.bf16.mxu0 %v261
    %315 = vmatpush1.bf16.msra.mxu0 %v260
    %316 = vmatprep.subr.bf16.mxu0 0
    %317 = vmatpush2.bf16.msra.mxu0 0
    %318 = vmatprep.subr.bf16.mxu0 0
    %319 = vmatpush2.bf16.msra.mxu0 0
    %320 = vmatprep.subr.bf16.mxu0 0
    %321 = vmatpush2.bf16.msra.mxu0 0
    %322 = vmatprep.subr.bf16.mxu0 0
    %323 = vmatpush2.bf16.msra.mxu0 0
    %324 = vmatprep.subr.bf16.mxu0 0
    %325 = vmatpush2.bf16.msra.mxu0 0
    %326 = vmatprep.subr.bf16.mxu0 0
    %327 = vmatpush2.bf16.msra.mxu0 0
    %328 = vmatprep.subr.bf16.mxu0 0
    %329 = vmatpush2.bf16.msra.mxu0 0
    %330 = vmatprep.subr.bf16.mxu0 0
    %331 = vmatpush2.bf16.msra.mxu0 0
    %332 = vmatprep.mubr.bf16.mxu0 0
    %333 = vmatmul.mubr.bf16.gmra.mxu0 %v298
    %v334 = vpop.f32.mrf.mxu0
    %v335 = vadd.f32 %v188, %v334
    %v336 = vpop.f32.mrf.mxu0
    %v337 = vadd.f32 %v192, %v336
    %v338 = vpop.f32.mrf.mxu0
    %v339 = vadd.f32 %v188, %v338
    %v340 = vpop.f32.mrf.mxu0
    %v341 = vadd.f32 %v192, %v340
    %342 = vdwg.mxu0
    %343 = vmatprep.subr.bf16.mxu0 0
    %344 = vmatpush1.bf16.msra.mxu0 0
    %345 = vmatprep.subr.bf16.mxu0 0
    %346 = vmatpush1.bf16.msra.mxu0 0
    %347 = vmatprep.subr.bf16.mxu0 0
    %348 = vmatpush1.bf16.msra.mxu0 %v277
    %349 = vmatprep.subr.bf16.mxu0 0
    %350 = vmatpush1.bf16.msra.mxu0 %v274
    %351 = vmatprep.subr.bf16.mxu0 0
    %352 = vmatpush1.bf16.msra.mxu0 %v271
    %353 = vmatprep.subr.bf16.mxu0 0
    %354 = vmatpush1.bf16.msra.mxu0 %v268
    %355 = vmatprep.subr.bf16.mxu0 0
    %356 = vmatpush1.bf16.msra.mxu0 %v265
    %357 = vmatprep.subr.bf16.mxu0 0
    %358 = vmatpush1.bf16.msra.mxu0 %v262
    %359 = vmatprep.subr.bf16.mxu0 0
    %360 = vmatpush2.bf16.msra.mxu0 0
    %361 = vmatprep.subr.bf16.mxu0 0
    %362 = vmatpush2.bf16.msra.mxu0 0
    %363 = vmatprep.subr.bf16.mxu0 0
    %364 = vmatpush2.bf16.msra.mxu0 0
    %365 = vmatprep.subr.bf16.mxu0 0
    %366 = vmatpush2.bf16.msra.mxu0 0
    %367 = vmatprep.subr.bf16.mxu0 0
    %368 = vmatpush2.bf16.msra.mxu0 0
    %369 = vmatprep.subr.bf16.mxu0 0
    %370 = vmatpush2.bf16.msra.mxu0 0
    %371 = vmatprep.subr.bf16.mxu0 0
    %372 = vmatpush2.bf16.msra.mxu0 0
    %373 = vmatprep.subr.bf16.mxu0 0
    %374 = vmatpush2.bf16.msra.mxu0 0
    %375 = vmatprep.mubr.bf16.mxu0 0
    %376 = vmatmul.mubr.bf16.gmra.mxu0 %v298
    %v377 = vpop.f32.mrf.mxu0
    %v378 = vadd.f32 %v196, %v377
    %v379 = vpop.f32.mrf.mxu0
    %v380 = vpop.f32.mrf.mxu0
    %v381 = vadd.f32 %v196, %v380
    %v382 = vpop.f32.mrf.mxu0
    %383 = vdwg.mxu0
    %v384 = vadd.f32 %v335, %v378
    %v385 = vadd.f32 %v339, %v381
    %v386 = vxor.u32 %v337, 2147483648
    %v387 = vxor.u32 %v341, 2147483648
    %v388 = vmul.f32 %v386, 1.442695
    %v389 = vpow.pop %v388
    %v390 = vmul.f32 %v387, 1.442695
    %v391 = vpow.pop %v390
    %v392 = vadd.f32 %v389, 1.0
    %v393 = vadd.f32 %v391, 1.0
    %v394 = vrcp.pop %v392
    %v395 = vmul.f32 1.0, %v394
    %v396 = vrcp.pop %v393
    %v397 = vmul.f32 1.0, %v396
    %v398 = vmul.f32 %v384, %v395
    %v399 = vmul.f32 %v385, %v397
    %v400 = vpack.c.bf16 %v399, %v398
    %v401 = vld [vmem:[%s3] sm:$0xf]
    %v402 = vld [vmem:[%s3 + $0x4] sm:$0xf]
    %v403 = vld [vmem:[%s3 + $0x8] sm:$0xf]
    %v404 = vld [vmem:[%s3 + $0xc] sm:$0xf]
    %v405 = vld [vmem:[%s3 + $0x10] sm:$0xf]
    %v406 = vld [vmem:[%s3 + $0x14] sm:$0xf]
    %v407 = vld [vmem:[%s3 + $0x18] sm:$0xf]
    %v408 = vld [vmem:[%s3 + $0x1c] sm:$0xf]
    %v409 = vld [vmem:[%s3 + $0x20] sm:$0xf]
    %v410 = vld [vmem:[%s3 + $0x24] sm:$0xf]
    %v411 = vld [vmem:[%s3 + $0x28] sm:$0xf]
    %v412 = vld [vmem:[%s3 + $0x2c] sm:$0xf]
    %v413 = vld [vmem:[%s3 + $0x30] sm:$0xf]
    %v414 = vld [vmem:[%s3 + $0x34] sm:$0xf]
    %v415 = vld [vmem:[%s3 + $0x38] sm:$0xf]
    %v416 = vld [vmem:[%s3 + $0x3c] sm:$0xf]
    %v417 = vld [vmem:[%s4] sm:$0x1]
    %v419 = vlaneseq
    %v420 = vshrl.u32 %v419, 7
    %v421 = vsub.s32 0, %v420
    %v422 = vrot.slane %v417, %v421
    %v440 = vunpack.c.l.b16 %v401
    %v441 = vunpack.c.l.b16 %v402
    %v442 = vunpack.c.l.b16 %v403
    %v443 = vunpack.c.l.b16 %v404
    %v444 = vunpack.c.l.b16 %v405
    %v445 = vunpack.c.l.b16 %v406
    %v446 = vunpack.c.l.b16 %v407
    %v447 = vunpack.c.l.b16 %v408
    %v448 = vunpack.c.l.b16 %v409
    %v449 = vunpack.c.l.b16 %v410
    %v450 = vunpack.c.l.b16 %v411
    %v451 = vunpack.c.l.b16 %v412
    %v452 = vunpack.c.l.b16 %v413
    %v453 = vunpack.c.l.b16 %v414
    %v454 = vunpack.c.l.b16 %v415
    %v455 = vunpack.c.l.b16 %v416
    %v456 = vpack.c.b16 %v441, %v440
    %v457 = vpack.c.b16 %v443, %v442
    %v458 = vpack.c.b16 %v445, %v444
    %v459 = vpack.c.b16 %v447, %v446
    %v460 = vpack.c.b16 %v449, %v448
    %v461 = vpack.c.b16 %v451, %v450
    %v462 = vpack.c.b16 %v453, %v452
    %v463 = vpack.c.b16 %v455, %v454
    %472 = vmatprep.subr.bf16.mxu0 0
    %473 = vmatpush1.bf16.msra.mxu0 %v463
    %474 = vmatprep.subr.bf16.mxu0 0
    %475 = vmatpush1.bf16.msra.mxu0 %v462
    %476 = vmatprep.subr.bf16.mxu0 0
    %477 = vmatpush1.bf16.msra.mxu0 %v461
    %478 = vmatprep.subr.bf16.mxu0 0
    %479 = vmatpush1.bf16.msra.mxu0 %v460
    %480 = vmatprep.subr.bf16.mxu0 0
    %481 = vmatpush1.bf16.msra.mxu0 %v459
    %482 = vmatprep.subr.bf16.mxu0 0
    %483 = vmatpush1.bf16.msra.mxu0 %v458
    %484 = vmatprep.subr.bf16.mxu0 0
    %485 = vmatpush1.bf16.msra.mxu0 %v457
    %486 = vmatprep.subr.bf16.mxu0 0
    %487 = vmatpush1.bf16.msra.mxu0 %v456
    %488 = vmatprep.subr.bf16.mxu0 0
    %489 = vmatpush2.bf16.msra.mxu0 0
    %490 = vmatprep.subr.bf16.mxu0 0
    %491 = vmatpush2.bf16.msra.mxu0 0
    %492 = vmatprep.subr.bf16.mxu0 0
    %493 = vmatpush2.bf16.msra.mxu0 0
    %494 = vmatprep.subr.bf16.mxu0 0
    %495 = vmatpush2.bf16.msra.mxu0 0
    %496 = vmatprep.subr.bf16.mxu0 0
    %497 = vmatpush2.bf16.msra.mxu0 0
    %498 = vmatprep.subr.bf16.mxu0 0
    %499 = vmatpush2.bf16.msra.mxu0 0
    %500 = vmatprep.subr.bf16.mxu0 0
    %501 = vmatpush2.bf16.msra.mxu0 0
    %502 = vmatprep.subr.bf16.mxu0 0
    %503 = vmatpush2.bf16.msra.mxu0 0
    %504 = vmatprep.mubr.bf16.mxu0 0
    %505 = vmatmul.mubr.bf16.gmra.mxu0 %v400
    %v506 = vpop.f32.mrf.mxu0
    %v507 = vadd.f32 %v422, %v506
    %v508 = vpop.f32.mrf.mxu0
    %v509 = vpop.f32.mrf.mxu0
    %v510 = vadd.f32 %v422, %v509
    %v511 = vpop.f32.mrf.mxu0
    %512 = vdwg.mxu0
    %v513 = vmax.f32 %v507, 0.0
    %v514 = vmax.f32 %v510, 0.0
    %v516 = vrot.slane %v513, 1
    %v518 = vrot.slane %v513, 2
    %vm521 = vcmask 1046528
    %v522 = vrot.slane %v514, 1
    %v523 = vsel %vm521, %v516, %v522
    %v524 = vrot.slane %v514, 2
    %v525 = vsel %vm156, %v518, %v524
    %v526 = vrot.slane %v523, 2
    %v527 = vrot.slane %v522, 2
    %v528 = vsel %vm156, %v526, %v527
    %v529 = vrot.slane %v524, 2
    %v530 = vsel %vm156, %v529, %v529
    %vm534 = vcmask 1043456
    %v535 = vsel %vm534, %v513, %v525
    %v536 = vsel %vm534, %v516, %v528
    %v537 = vsel %vm534, %v518, %v530
    %v538 = vpack.c.bf16 %v535, %v535
    %v539 = vpack.c.bf16 %v536, %v536
    %v540 = vpack.c.bf16 %v537, %v537
    %v541 = vld [vmem:[#allocation7] sm:$0xff]
    %v542 = vld [vmem:[#allocation7 + $0x8] sm:$0xf]
    %v543 = vld [vmem:[#allocation7 + $0xc] sm:$0xff]
    %v544 = vld [vmem:[#allocation7 + $0x14] sm:$0xf]
    %v545 = vld [vmem:[#allocation7 + $0x18] sm:$0xff]
    %v546 = vld [vmem:[#allocation7 + $0x20] sm:$0xf]
    %v547 = vld [vmem:[#allocation7 + $0x24] sm:$0xff]
    %v548 = vld [vmem:[#allocation7 + $0x2c] sm:$0xf]
    %v549 = vld [vmem:[#allocation7 + $0x30] sm:$0xff]
    %v550 = vld [vmem:[#allocation7 + $0x38] sm:$0xf]
    %v551 = vld [vmem:[#allocation7 + $0x3c] sm:$0xff]
    %v552 = vld [vmem:[#allocation7 + $0x44] sm:$0xf]
    %v553 = vld [vmem:[#allocation7 + $0x48] sm:$0xff]
    %v554 = vld [vmem:[#allocation7 + $0x50] sm:$0xf]
    %v555 = vld [vmem:[#allocation7 + $0x54] sm:$0xff]
    %v556 = vld [vmem:[#allocation7 + $0x5c] sm:$0xf]
    %v557 = vld [vmem:[#allocation7 + $0x60] sm:$0xff]
    %v558 = vld [vmem:[#allocation7 + $0x68] sm:$0xf]
    %v559 = vld [vmem:[#allocation7 + $0x6c] sm:$0xff]
    %v560 = vld [vmem:[#allocation7 + $0x74] sm:$0xf]
    %v561 = vld [vmem:[#allocation7 + $0x78] sm:$0xff]
    %v562 = vld [vmem:[#allocation7 + $0x80] sm:$0xf]
    %v563 = vld [vmem:[#allocation7 + $0x84] sm:$0xff]
    %v564 = vld [vmem:[#allocation7 + $0x8c] sm:$0xf]
    %v565 = vld [vmem:[#allocation7 + $0x90] sm:$0xff]
    %v566 = vld [vmem:[#allocation7 + $0x98] sm:$0xf]
    %v567 = vld [vmem:[#allocation7 + $0x9c] sm:$0xff]
    %v568 = vld [vmem:[#allocation7 + $0xa4] sm:$0xf]
    %v569 = vld [vmem:[#allocation7 + $0xa8] sm:$0xff]
    %v570 = vld [vmem:[#allocation7 + $0xb0] sm:$0xf]
    %v571 = vld [vmem:[#allocation7 + $0xb4] sm:$0xff]
    %v572 = vld [vmem:[#allocation7 + $0xbc] sm:$0xf]
    %v573 = vld [vmem:[#allocation7 + $0xc0] sm:$0xff]
    %v574 = vld [vmem:[#allocation7 + $0xc8] sm:$0xf]
    %v575 = vld [vmem:[#allocation7 + $0xcc] sm:$0xff]
    %v576 = vld [vmem:[#allocation7 + $0xd4] sm:$0xf]
    %v577 = vld [vmem:[#allocation7 + $0xd8] sm:$0xff]
    %v578 = vld [vmem:[#allocation7 + $0xe0] sm:$0xf]
    %v579 = vld [vmem:[#allocation7 + $0xe4] sm:$0xff]
    %v580 = vld [vmem:[#allocation7 + $0xec] sm:$0xf]
    %v581 = vld [vmem:[#allocation7 + $0xf0] sm:$0xff]
    %v582 = vld [vmem:[#allocation7 + $0xf8] sm:$0xf]
    %v583 = vld [vmem:[#allocation7 + $0xfc] sm:$0xff]
    %v584 = vld [vmem:[#allocation7 + $0x104] sm:$0xf]
    %v585 = vld [vmem:[#allocation7 + $0x108] sm:$0xff]
    %v586 = vld [vmem:[#allocation7 + $0x110] sm:$0xf]
    %v587 = vld [vmem:[#allocation7 + $0x114] sm:$0xff]
    %v588 = vld [vmem:[#allocation7 + $0x11c] sm:$0xf]
    %v589 = vld [vmem:[#allocation7 + $0x120] sm:$0xff]
    %v590 = vld [vmem:[#allocation7 + $0x128] sm:$0xf]
    %v591 = vld [vmem:[#allocation7 + $0x12c] sm:$0xff]
    %v592 = vld [vmem:[#allocation7 + $0x134] sm:$0xf]
    %v593 = vld [vmem:[#allocation7 + $0x138] sm:$0xff]
    %v594 = vld [vmem:[#allocation7 + $0x140] sm:$0xf]
    %v595 = vld [vmem:[#allocation7 + $0x144] sm:$0xff]
    %v596 = vld [vmem:[#allocation7 + $0x14c] sm:$0xf]
    %v597 = vld [vmem:[#allocation7 + $0x150] sm:$0xff]
    %v598 = vld [vmem:[#allocation7 + $0x158] sm:$0xf]
    %v599 = vld [vmem:[#allocation7 + $0x15c] sm:$0xff]
    %v600 = vld [vmem:[#allocation7 + $0x164] sm:$0xf]
    %v601 = vld [vmem:[#allocation7 + $0x168] sm:$0xff]
    %v602 = vld [vmem:[#allocation7 + $0x170] sm:$0xf]
    %v603 = vld [vmem:[#allocation7 + $0x174] sm:$0xff]
    %v604 = vld [vmem:[#allocation7 + $0x17c] sm:$0xf]
    %v605 = vld [vmem:[#allocation7 + $0x180] sm:$0xff]
    %v606 = vld [vmem:[#allocation7 + $0x188] sm:$0xf]
    %v607 = vld [vmem:[#allocation7 + $0x18c] sm:$0xff]
    %v608 = vld [vmem:[#allocation7 + $0x194] sm:$0xf]
    %v609 = vld [vmem:[#allocation7 + $0x198] sm:$0xff]
    %v610 = vld [vmem:[#allocation7 + $0x1a0] sm:$0xf]
    %v611 = vld [vmem:[#allocation7 + $0x1a4] sm:$0xff]
    %v612 = vld [vmem:[#allocation7 + $0x1ac] sm:$0xf]
    %v613 = vld [vmem:[#allocation7 + $0x1b0] sm:$0xff]
    %v614 = vld [vmem:[#allocation7 + $0x1b8] sm:$0xf]
    %v615 = vld [vmem:[#allocation7 + $0x1bc] sm:$0xff]
    %v616 = vld [vmem:[#allocation7 + $0x1c4] sm:$0xf]
    %v617 = vld [vmem:[#allocation7 + $0x1c8] sm:$0xff]
    %v618 = vld [vmem:[#allocation7 + $0x1d0] sm:$0xf]
    %v619 = vld [vmem:[#allocation7 + $0x1d4] sm:$0xff]
    %v620 = vld [vmem:[#allocation7 + $0x1dc] sm:$0xf]
    %v621 = vld [vmem:[#allocation7 + $0x1e0] sm:$0xff]
    %v622 = vld [vmem:[#allocation7 + $0x1e8] sm:$0xf]
    %v623 = vld [vmem:[#allocation7 + $0x1ec] sm:$0xff]
    %v624 = vld [vmem:[#allocation7 + $0x1f4] sm:$0xf]
    %v625 = vld [vmem:[#allocation7 + $0x1f8] sm:$0xff]
    %v626 = vld [vmem:[#allocation7 + $0x200] sm:$0xf]
    %v627 = vld [vmem:[#allocation7 + $0x204] sm:$0xff]
    %v628 = vld [vmem:[#allocation7 + $0x20c] sm:$0xf]
    %v629 = vld [vmem:[#allocation7 + $0x210] sm:$0xff]
    %v630 = vld [vmem:[#allocation7 + $0x218] sm:$0xf]
    %v631 = vld [vmem:[#allocation7 + $0x21c] sm:$0xff]
    %v632 = vld [vmem:[#allocation7 + $0x224] sm:$0xf]
    %v633 = vld [vmem:[#allocation7 + $0x228] sm:$0xff]
    %v634 = vld [vmem:[#allocation7 + $0x230] sm:$0xf]
    %v635 = vld [vmem:[#allocation7 + $0x234] sm:$0xff]
    %v636 = vld [vmem:[#allocation7 + $0x23c] sm:$0xf]
    %v637 = vld [vmem:[%s6] sm:$0x7]
    %v639 = vlaneseq
    %v640 = vshrl.u32 %v639, 7
    %v641 = vsub.s32 0, %v640
    %v642 = vrot.slane %v637, %v641
    %v643 = vlaneseq
    %v644 = vshrl.u32 %v643, 7
    %v645 = vsub.s32 1, %v644
    %v646 = vrot.slane %v637, %v645
    %v647 = vlaneseq
    %v648 = vshrl.u32 %v647, 7
    %v649 = vsub.s32 2, %v648
    %v650 = vrot.slane %v637, %v649
    %v750 = vunpack.c.l.b16 %v541
    %v751 = vunpack.c.h.b16 %v541
    %v752 = vunpack.c.l.b16 %v542
    %v753 = vunpack.c.l.b16 %v543
    %v754 = vunpack.c.h.b16 %v543
    %v755 = vunpack.c.l.b16 %v544
    %v756 = vunpack.c.l.b16 %v545
    %v757 = vunpack.c.h.b16 %v545
    %v758 = vunpack.c.l.b16 %v546
    %v759 = vunpack.c.l.b16 %v547
    %v760 = vunpack.c.h.b16 %v547
    %v761 = vunpack.c.l.b16 %v548
    %v762 = vunpack.c.l.b16 %v549
    %v763 = vunpack.c.h.b16 %v549
    %v764 = vunpack.c.l.b16 %v550
    %v765 = vunpack.c.l.b16 %v551
    %v766 = vunpack.c.h.b16 %v551
    %v767 = vunpack.c.l.b16 %v552
    %v768 = vunpack.c.l.b16 %v553
    %v769 = vunpack.c.h.b16 %v553
    %v770 = vunpack.c.l.b16 %v554
    %v771 = vunpack.c.l.b16 %v555
    %v772 = vunpack.c.h.b16 %v555
    %v773 = vunpack.c.l.b16 %v556
    %v774 = vunpack.c.l.b16 %v557
    %v775 = vunpack.c.h.b16 %v557
    %v776 = vunpack.c.l.b16 %v558
    %v777 = vunpack.c.l.b16 %v559
    %v778 = vunpack.c.h.b16 %v559
    %v779 = vunpack.c.l.b16 %v560
    %v780 = vunpack.c.l.b16 %v561
    %v781 = vunpack.c.h.b16 %v561
    %v782 = vunpack.c.l.b16 %v562
    %v783 = vunpack.c.l.b16 %v563
    %v784 = vunpack.c.h.b16 %v563
    %v785 = vunpack.c.l.b16 %v564
    %v786 = vunpack.c.l.b16 %v565
    %v787 = vunpack.c.h.b16 %v565
    %v788 = vunpack.c.l.b16 %v566
    %v789 = vunpack.c.l.b16 %v567
    %v790 = vunpack.c.h.b16 %v567
    %v791 = vunpack.c.l.b16 %v568
    %v792 = vunpack.c.l.b16 %v569
    %v793 = vunpack.c.h.b16 %v569
    %v794 = vunpack.c.l.b16 %v570
    %v795 = vunpack.c.l.b16 %v571
    %v796 = vunpack.c.h.b16 %v571
    %v797 = vunpack.c.l.b16 %v572
    %v798 = vunpack.c.l.b16 %v573
    %v799 = vunpack.c.h.b16 %v573
    %v800 = vunpack.c.l.b16 %v574
    %v801 = vunpack.c.l.b16 %v575
    %v802 = vunpack.c.h.b16 %v575
    %v803 = vunpack.c.l.b16 %v576
    %v804 = vunpack.c.l.b16 %v577
    %v805 = vunpack.c.h.b16 %v577
    %v806 = vunpack.c.l.b16 %v578
    %v807 = vunpack.c.l.b16 %v579
    %v808 = vunpack.c.h.b16 %v579
    %v809 = vunpack.c.l.b16 %v580
    %v810 = vunpack.c.l.b16 %v581
    %v811 = vunpack.c.h.b16 %v581
    %v812 = vunpack.c.l.b16 %v582
    %v813 = vunpack.c.l.b16 %v583
    %v814 = vunpack.c.h.b16 %v583
    %v815 = vunpack.c.l.b16 %v584
    %v816 = vunpack.c.l.b16 %v585
    %v817 = vunpack.c.h.b16 %v585
    %v818 = vunpack.c.l.b16 %v586
    %v819 = vunpack.c.l.b16 %v587
    %v820 = vunpack.c.h.b16 %v587
    %v821 = vunpack.c.l.b16 %v588
    %v822 = vunpack.c.l.b16 %v589
    %v823 = vunpack.c.h.b16 %v589
    %v824 = vunpack.c.l.b16 %v590
    %v825 = vunpack.c.l.b16 %v591
    %v826 = vunpack.c.h.b16 %v591
    %v827 = vunpack.c.l.b16 %v592
    %v828 = vunpack.c.l.b16 %v593
    %v829 = vunpack.c.h.b16 %v593
    %v830 = vunpack.c.l.b16 %v594
    %v831 = vunpack.c.l.b16 %v595
    %v832 = vunpack.c.h.b16 %v595
    %v833 = vunpack.c.l.b16 %v596
    %v834 = vunpack.c.l.b16 %v597
    %v835 = vunpack.c.h.b16 %v597
    %v836 = vunpack.c.l.b16 %v598
    %v837 = vunpack.c.l.b16 %v599
    %v838 = vunpack.c.h.b16 %v599
    %v839 = vunpack.c.l.b16 %v600
    %v840 = vunpack.c.l.b16 %v601
    %v841 = vunpack.c.h.b16 %v601
    %v842 = vunpack.c.l.b16 %v602
    %v843 = vunpack.c.l.b16 %v603
    %v844 = vunpack.c.h.b16 %v603
    %v845 = vunpack.c.l.b16 %v604
    %v846 = vunpack.c.l.b16 %v605
    %v847 = vunpack.c.h.b16 %v605
    %v848 = vunpack.c.l.b16 %v606
    %v849 = vunpack.c.l.b16 %v607
    %v850 = vunpack.c.h.b16 %v607
    %v851 = vunpack.c.l.b16 %v608
    %v852 = vunpack.c.l.b16 %v609
    %v853 = vunpack.c.h.b16 %v609
    %v854 = vunpack.c.l.b16 %v610
    %v855 = vunpack.c.l.b16 %v611
    %v856 = vunpack.c.h.b16 %v611
    %v857 = vunpack.c.l.b16 %v612
    %v858 = vunpack.c.l.b16 %v613
    %v859 = vunpack.c.h.b16 %v613
    %v860 = vunpack.c.l.b16 %v614
    %v861 = vunpack.c.l.b16 %v615
    %v862 = vunpack.c.h.b16 %v615
    %v863 = vunpack.c.l.b16 %v616
    %v864 = vunpack.c.l.b16 %v617
    %v865 = vunpack.c.h.b16 %v617
    %v866 = vunpack.c.l.b16 %v618
    %v867 = vunpack.c.l.b16 %v619
    %v868 = vunpack.c.h.b16 %v619
    %v869 = vunpack.c.l.b16 %v620
    %v870 = vunpack.c.l.b16 %v621
    %v871 = vunpack.c.h.b16 %v621
    %v872 = vunpack.c.l.b16 %v622
    %v873 = vunpack.c.l.b16 %v623
    %v874 = vunpack.c.h.b16 %v623
    %v875 = vunpack.c.l.b16 %v624
    %v876 = vunpack.c.l.b16 %v625
    %v877 = vunpack.c.h.b16 %v625
    %v878 = vunpack.c.l.b16 %v626
    %v879 = vunpack.c.l.b16 %v627
    %v880 = vunpack.c.h.b16 %v627
    %v881 = vunpack.c.l.b16 %v628
    %v882 = vunpack.c.l.b16 %v629
    %v883 = vunpack.c.h.b16 %v629
    %v884 = vunpack.c.l.b16 %v630
    %v885 = vunpack.c.l.b16 %v631
    %v886 = vunpack.c.h.b16 %v631
    %v887 = vunpack.c.l.b16 %v632
    %v888 = vunpack.c.l.b16 %v633
    %v889 = vunpack.c.h.b16 %v633
    %v890 = vunpack.c.l.b16 %v634
    %v891 = vunpack.c.l.b16 %v635
    %v892 = vunpack.c.h.b16 %v635
    %v893 = vunpack.c.l.b16 %v636
    %v894 = vpack.c.b16 %v753, %v750
    %v895 = vpack.c.b16 %v754, %v751
    %v896 = vpack.c.b16 %v755, %v752
    %v897 = vpack.c.b16 %v759, %v756
    %v898 = vpack.c.b16 %v760, %v757
    %v899 = vpack.c.b16 %v761, %v758
    %v900 = vpack.c.b16 %v765, %v762
    %v901 = vpack.c.b16 %v766, %v763
    %v902 = vpack.c.b16 %v767, %v764
    %v903 = vpack.c.b16 %v771, %v768
    %v904 = vpack.c.b16 %v772, %v769
    %v905 = vpack.c.b16 %v773, %v770
    %v906 = vpack.c.b16 %v777, %v774
    %v907 = vpack.c.b16 %v778, %v775
    %v908 = vpack.c.b16 %v779, %v776
    %v909 = vpack.c.b16 %v783, %v780
    %v910 = vpack.c.b16 %v784, %v781
    %v911 = vpack.c.b16 %v785, %v782
    %v912 = vpack.c.b16 %v789, %v786
    %v913 = vpack.c.b16 %v790, %v787
    %v914 = vpack.c.b16 %v791, %v788
    %v915 = vpack.c.b16 %v795, %v792
    %v916 = vpack.c.b16 %v796, %v793
    %v917 = vpack.c.b16 %v797, %v794
    %v918 = vpack.c.b16 %v801, %v798
    %v919 = vpack.c.b16 %v802, %v799
    %v920 = vpack.c.b16 %v803, %v800
    %v921 = vpack.c.b16 %v807, %v804
    %v922 = vpack.c.b16 %v808, %v805
    %v923 = vpack.c.b16 %v809, %v806
    %v924 = vpack.c.b16 %v813, %v810
    %v925 = vpack.c.b16 %v814, %v811
    %v926 = vpack.c.b16 %v815, %v812
    %v927 = vpack.c.b16 %v819, %v816
    %v928 = vpack.c.b16 %v820, %v817
    %v929 = vpack.c.b16 %v821, %v818
    %v930 = vpack.c.b16 %v825, %v822
    %v931 = vpack.c.b16 %v826, %v823
    %v932 = vpack.c.b16 %v827, %v824
    %v933 = vpack.c.b16 %v831, %v828
    %v934 = vpack.c.b16 %v832, %v829
    %v935 = vpack.c.b16 %v833, %v830
    %v936 = vpack.c.b16 %v837, %v834
    %v937 = vpack.c.b16 %v838, %v835
    %v938 = vpack.c.b16 %v839, %v836
    %v939 = vpack.c.b16 %v843, %v840
    %v940 = vpack.c.b16 %v844, %v841
    %v941 = vpack.c.b16 %v845, %v842
    %v942 = vpack.c.b16 %v849, %v846
    %v943 = vpack.c.b16 %v850, %v847
    %v944 = vpack.c.b16 %v851, %v848
    %v945 = vpack.c.b16 %v855, %v852
    %v946 = vpack.c.b16 %v856, %v853
    %v947 = vpack.c.b16 %v857, %v854
    %v948 = vpack.c.b16 %v861, %v858
    %v949 = vpack.c.b16 %v862, %v859
    %v950 = vpack.c.b16 %v863, %v860
    %v951 = vpack.c.b16 %v867, %v864
    %v952 = vpack.c.b16 %v868, %v865
    %v953 = vpack.c.b16 %v869, %v866
    %v954 = vpack.c.b16 %v873, %v870
    %v955 = vpack.c.b16 %v874, %v871
    %v956 = vpack.c.b16 %v875, %v872
    %v957 = vpack.c.b16 %v879, %v876
    %v958 = vpack.c.b16 %v880, %v877
    %v959 = vpack.c.b16 %v881, %v878
    %v960 = vpack.c.b16 %v885, %v882
    %v961 = vpack.c.b16 %v886, %v883
    %v962 = vpack.c.b16 %v887, %v884
    %v963 = vpack.c.b16 %v891, %v888
    %v964 = vpack.c.b16 %v892, %v889
    %v965 = vpack.c.b16 %v893, %v890
    %1038 = vmatprep.subr.bf16.mxu0 %v916
    %1039 = vmatpush1.bf16.msra.mxu0 %v915
    %1040 = vmatprep.subr.bf16.mxu0 %v913
    %1041 = vmatpush1.bf16.msra.mxu0 %v912
    %1042 = vmatprep.subr.bf16.mxu0 %v910
    %1043 = vmatpush1.bf16.msra.mxu0 %v909
    %1044 = vmatprep.subr.bf16.mxu0 %v907
    %1045 = vmatpush1.bf16.msra.mxu0 %v906
    %1046 = vmatprep.subr.bf16.mxu0 %v904
    %1047 = vmatpush1.bf16.msra.mxu0 %v903
    %1048 = vmatprep.subr.bf16.mxu0 %v901
    %1049 = vmatpush1.bf16.msra.mxu0 %v900
    %1050 = vmatprep.subr.bf16.mxu0 %v898
    %1051 = vmatpush1.bf16.msra.mxu0 %v897
    %1052 = vmatprep.subr.bf16.mxu0 %v895
    %1053 = vmatpush1.bf16.msra.mxu0 %v894
    %1054 = vmatprep.subr.bf16.mxu0 %v940
    %1055 = vmatpush2.bf16.msra.mxu0 %v939
    %1056 = vmatprep.subr.bf16.mxu0 %v937
    %1057 = vmatpush2.bf16.msra.mxu0 %v936
    %1058 = vmatprep.subr.bf16.mxu0 %v934
    %1059 = vmatpush2.bf16.msra.mxu0 %v933
    %1060 = vmatprep.subr.bf16.mxu0 %v931
    %1061 = vmatpush2.bf16.msra.mxu0 %v930
    %1062 = vmatprep.subr.bf16.mxu0 %v928
    %1063 = vmatpush2.bf16.msra.mxu0 %v927
    %1064 = vmatprep.subr.bf16.mxu0 %v925
    %1065 = vmatpush2.bf16.msra.mxu0 %v924
    %1066 = vmatprep.subr.bf16.mxu0 %v922
    %1067 = vmatpush2.bf16.msra.mxu0 %v921
    %1068 = vmatprep.subr.bf16.mxu0 %v919
    %1069 = vmatpush2.bf16.msra.mxu0 %v918
    %1070 = vmatprep.mubr.bf16.mxu0 %v539
    %1071 = vmatmul.mubr.bf16.gmra.mxu0 %v538
    %v1072 = vpop.f32.mrf.mxu0
    %v1073 = vadd.f32 %v642, %v1072
    %v1074 = vpop.f32.mrf.mxu0
    %v1075 = vadd.f32 %v646, %v1074
    %v1076 = vpop.f32.mrf.mxu0
    %v1077 = vpop.f32.mrf.mxu0
    %1078 = vdwg.mxu0
    %1079 = vmatprep.subr.bf16.mxu0 %v964
    %1080 = vmatpush1.bf16.msra.mxu0 %v963
    %1081 = vmatprep.subr.bf16.mxu0 %v961
    %1082 = vmatpush1.bf16.msra.mxu0 %v960
    %1083 = vmatprep.subr.bf16.mxu0 %v958
    %1084 = vmatpush1.bf16.msra.mxu0 %v957
    %1085 = vmatprep.subr.bf16.mxu0 %v955
    %1086 = vmatpush1.bf16.msra.mxu0 %v954
    %1087 = vmatprep.subr.bf16.mxu0 %v952
    %1088 = vmatpush1.bf16.msra.mxu0 %v951
    %1089 = vmatprep.subr.bf16.mxu0 %v949
    %1090 = vmatpush1.bf16.msra.mxu0 %v948
    %1091 = vmatprep.subr.bf16.mxu0 %v946
    %1092 = vmatpush1.bf16.msra.mxu0 %v945
    %1093 = vmatprep.subr.bf16.mxu0 %v943
    %1094 = vmatpush1.bf16.msra.mxu0 %v942
    %1095 = vmatprep.subr.bf16.mxu0 0
    %1096 = vmatpush2.bf16.msra.mxu0 0
    %1097 = vmatprep.subr.bf16.mxu0 0
    %1098 = vmatpush2.bf16.msra.mxu0 0
    %1099 = vmatprep.subr.bf16.mxu0 0
    %1100 = vmatpush2.bf16.msra.mxu0 0
    %1101 = vmatprep.subr.bf16.mxu0 0
    %1102 = vmatpush2.bf16.msra.mxu0 0
    %1103 = vmatprep.subr.bf16.mxu0 0
    %1104 = vmatpush2.bf16.msra.mxu0 0
    %1105 = vmatprep.subr.bf16.mxu0 0
    %1106 = vmatpush2.bf16.msra.mxu0 0
    %1107 = vmatprep.subr.bf16.mxu0 0
    %1108 = vmatpush2.bf16.msra.mxu0 0
    %1109 = vmatprep.subr.bf16.mxu0 0
    %1110 = vmatpush2.bf16.msra.mxu0 0
    %1111 = vmatprep.mubr.bf16.mxu0 0
    %1112 = vmatmul.mubr.bf16.gmra.mxu0 %v540
    %v1113 = vpop.f32.mrf.mxu0
    %v1114 = vadd.f32 %v1073, %v1113
    %v1115 = vpop.f32.mrf.mxu0
    %v1116 = vadd.f32 %v1075, %v1115
    %v1117 = vpop.f32.mrf.mxu0
    %v1118 = vpop.f32.mrf.mxu0
    %1119 = vdwg.mxu0
    %1120 = vmatprep.subr.bf16.mxu0 0
    %1121 = vmatpush1.bf16.msra.mxu0 %v917
    %1122 = vmatprep.subr.bf16.mxu0 0
    %1123 = vmatpush1.bf16.msra.mxu0 %v914
    %1124 = vmatprep.subr.bf16.mxu0 0
    %1125 = vmatpush1.bf16.msra.mxu0 %v911
    %1126 = vmatprep.subr.bf16.mxu0 0
    %1127 = vmatpush1.bf16.msra.mxu0 %v908
    %1128 = vmatprep.subr.bf16.mxu0 0
    %1129 = vmatpush1.bf16.msra.mxu0 %v905
    %1130 = vmatprep.subr.bf16.mxu0 0
    %1131 = vmatpush1.bf16.msra.mxu0 %v902
    %1132 = vmatprep.subr.bf16.mxu0 0
    %1133 = vmatpush1.bf16.msra.mxu0 %v899
    %1134 = vmatprep.subr.bf16.mxu0 0
    %1135 = vmatpush1.bf16.msra.mxu0 %v896
    %1136 = vmatprep.subr.bf16.mxu0 0
    %1137 = vmatpush2.bf16.msra.mxu0 %v941
    %1138 = vmatprep.subr.bf16.mxu0 0
    %1139 = vmatpush2.bf16.msra.mxu0 %v938
    %1140 = vmatprep.subr.bf16.mxu0 0
    %1141 = vmatpush2.bf16.msra.mxu0 %v935
    %1142 = vmatprep.subr.bf16.mxu0 0
    %1143 = vmatpush2.bf16.msra.mxu0 %v932
    %1144 = vmatprep.subr.bf16.mxu0 0
    %1145 = vmatpush2.bf16.msra.mxu0 %v929
    %1146 = vmatprep.subr.bf16.mxu0 0
    %1147 = vmatpush2.bf16.msra.mxu0 %v926
    %1148 = vmatprep.subr.bf16.mxu0 0
    %1149 = vmatpush2.bf16.msra.mxu0 %v923
    %1150 = vmatprep.subr.bf16.mxu0 0
    %1151 = vmatpush2.bf16.msra.mxu0 %v920
    %1152 = vmatprep.mubr.bf16.mxu0 %v539
    %1153 = vmatmul.mubr.bf16.gmra.mxu0 %v538
    %v1154 = vpop.f32.mrf.mxu0
    %v1155 = vadd.f32 %v650, %v1154
    %v1156 = vpop.f32.mrf.mxu0
    %v1157 = vpop.f32.mrf.mxu0
    %v1158 = vpop.f32.mrf.mxu0
    %1159 = vdwg.mxu0
    %1160 = vmatprep.subr.bf16.mxu0 0
    %1161 = vmatpush1.bf16.msra.mxu0 %v965
    %1162 = vmatprep.subr.bf16.mxu0 0
    %1163 = vmatpush1.bf16.msra.mxu0 %v962
    %1164 = vmatprep.subr.bf16.mxu0 0
    %1165 = vmatpush1.bf16.msra.mxu0 %v959
    %1166 = vmatprep.subr.bf16.mxu0 0
    %1167 = vmatpush1.bf16.msra.mxu0 %v956
    %1168 = vmatprep.subr.bf16.mxu0 0
    %1169 = vmatpush1.bf16.msra.mxu0 %v953
    %1170 = vmatprep.subr.bf16.mxu0 0
    %1171 = vmatpush1.bf16.msra.mxu0 %v950
    %1172 = vmatprep.subr.bf16.mxu0 0
    %1173 = vmatpush1.bf16.msra.mxu0 %v947
    %1174 = vmatprep.subr.bf16.mxu0 0
    %1175 = vmatpush1.bf16.msra.mxu0 %v944
    %1176 = vmatprep.subr.bf16.mxu0 0
    %1177 = vmatpush2.bf16.msra.mxu0 0
    %1178 = vmatprep.subr.bf16.mxu0 0
    %1179 = vmatpush2.bf16.msra.mxu0 0
    %1180 = vmatprep.subr.bf16.mxu0 0
    %1181 = vmatpush2.bf16.msra.mxu0 0
    %1182 = vmatprep.subr.bf16.mxu0 0
    %1183 = vmatpush2.bf16.msra.mxu0 0
    %1184 = vmatprep.subr.bf16.mxu0 0
    %1185 = vmatpush2.bf16.msra.mxu0 0
    %1186 = vmatprep.subr.bf16.mxu0 0
    %1187 = vmatpush2.bf16.msra.mxu0 0
    %1188 = vmatprep.subr.bf16.mxu0 0
    %1189 = vmatpush2.bf16.msra.mxu0 0
    %1190 = vmatprep.subr.bf16.mxu0 0
    %1191 = vmatpush2.bf16.msra.mxu0 0
    %1192 = vmatprep.mubr.bf16.mxu0 0
    %1193 = vmatmul.mubr.bf16.gmra.mxu0 %v540
    %v1194 = vpop.f32.mrf.mxu0
    %v1195 = vadd.f32 %v1155, %v1194
    %v1196 = vpop.f32.mrf.mxu0
    %v1197 = vpop.f32.mrf.mxu0
    %v1198 = vpop.f32.mrf.mxu0
    %1199 = vdwg.mxu0
    %v1200 = vadd.f32 %v1114, %v1195
    %v1201 = vxor.u32 %v1116, 2147483648
    %v1202 = vmul.f32 %v1201, 1.442695
    %v1203 = vpow.pop %v1202
    %v1204 = vadd.f32 %v1203, 1.0
    %v1205 = vrcp.pop %v1204
    %v1206 = vmul.f32 1.0, %v1205
    %v1207 = vmul.f32 %v1200, %v1206
    %1208 = vadd.xlane.f32.xlu0 %v1207
    %v1209 = vpop.xlane.xlu0 %1208
    %v1210 = vrcp.pop 128.0
    %v1211 = vmul.f32 %v1209, %v1210
    %v1212 = vsub.f32 %v1207, %v1211
    %v1213 = vmul.f32 %v1212, %v1212
    %1214 = vadd.xlane.f32.xlu0 %v1213
    %v1215 = vpop.xlane.xlu0 %1214
    %v1216 = vmul.f32 %v1215, %v1210
    %v1217 = vadd.f32 %v1216, 1e-05
    %v1218 = vrsqrt.pop %v1217
    %v1219 = vmul.f32 %v1212, %v1218
    %v1220 = vld [vmem:[%s7] sm:$0x1]
    %v1222 = vlaneseq
    %v1223 = vshrl.u32 %v1222, 7
    %v1224 = vsub.s32 0, %v1223
    %v1225 = vrot.slane %v1220, %v1224
    %v1227 = vmul.f32 %v1219, %v1225
    %v1228 = vld [vmem:[%s8] sm:$0x1]
    %v1230 = vlaneseq
    %v1231 = vshrl.u32 %v1230, 7
    %v1232 = vsub.s32 0, %v1231
    %v1233 = vrot.slane %v1228, %v1232
    %v1235 = vadd.f32 %v1227, %v1233
    %v1237 = vrot.slane %v1235, 1
    %v1239 = vrot.slane %v1235, 2
    %v1241 = vrot.slane %v1235, 3
    %v1243 = vrot.slane %v1237, 3
    %v1244 = vrot.slane %v1239, 3
    %v1245 = vrot.slane %v1241, 3
    %vm1249 = vcmask 1040384
    %v1250 = vsel %vm1249, %v1235, %v1241
    %v1251 = vsel %vm1249, %v1237, %v1243
    %v1252 = vsel %vm1249, %v1239, %v1244
    %v1253 = vsel %vm1249, %v1241, %v1245
    %v1254 = vpack.c.bf16 %v1250, %v1250
    %v1255 = vpack.c.bf16 %v1251, %v1251
    %v1256 = vpack.c.bf16 %v1252, %v1252
    %v1257 = vpack.c.bf16 %v1253, %v1253
    %v1258 = vld [vmem:[#allocation8] sm:$0xff]
    %v1259 = vld [vmem:[#allocation8 + $0x8] sm:$0xf]
    %v1260 = vld [vmem:[#allocation8 + $0xc] sm:$0xff]
    %v1261 = vld [vmem:[#allocation8 + $0x14] sm:$0xf]
    %v1262 = vld [vmem:[#allocation8 + $0x18] sm:$0xff]
    %v1263 = vld [vmem:[#allocation8 + $0x20] sm:$0xf]
    %v1264 = vld [vmem:[#allocation8 + $0x24] sm:$0xff]
    %v1265 = vld [vmem:[#allocation8 + $0x2c] sm:$0xf]
    %v1266 = vld [vmem:[#allocation8 + $0x30] sm:$0xff]
    %v1267 = vld [vmem:[#allocation8 + $0x38] sm:$0xf]
    %v1268 = vld [vmem:[#allocation8 + $0x3c] sm:$0xff]
    %v1269 = vld [vmem:[#allocation8 + $0x44] sm:$0xf]
    %v1270 = vld [vmem:[#allocation8 + $0x48] sm:$0xff]
    %v1271 = vld [vmem:[#allocation8 + $0x50] sm:$0xf]
    %v1272 = vld [vmem:[#allocation8 + $0x54] sm:$0xff]
    %v1273 = vld [vmem:[#allocation8 + $0x5c] sm:$0xf]
    %v1274 = vld [vmem:[#allocation8 + $0x60] sm:$0xff]
    %v1275 = vld [vmem:[#allocation8 + $0x68] sm:$0xf]
    %v1276 = vld [vmem:[#allocation8 + $0x6c] sm:$0xff]
    %v1277 = vld [vmem:[#allocation8 + $0x74] sm:$0xf]
    %v1278 = vld [vmem:[#allocation8 + $0x78] sm:$0xff]
    %v1279 = vld [vmem:[#allocation8 + $0x80] sm:$0xf]
    %v1280 = vld [vmem:[#allocation8 + $0x84] sm:$0xff]
    %v1281 = vld [vmem:[#allocation8 + $0x8c] sm:$0xf]
    %v1282 = vld [vmem:[#allocation8 + $0x90] sm:$0xff]
    %v1283 = vld [vmem:[#allocation8 + $0x98] sm:$0xf]
    %v1284 = vld [vmem:[#allocation8 + $0x9c] sm:$0xff]
    %v1285 = vld [vmem:[#allocation8 + $0xa4] sm:$0xf]
    %v1286 = vld [vmem:[#allocation8 + $0xa8] sm:$0xff]
    %v1287 = vld [vmem:[#allocation8 + $0xb0] sm:$0xf]
    %v1288 = vld [vmem:[#allocation8 + $0xb4] sm:$0xff]
    %v1289 = vld [vmem:[#allocation8 + $0xbc] sm:$0xf]
    %v1290 = vld [vmem:[#allocation8 + $0xc0] sm:$0xff]
    %v1291 = vld [vmem:[#allocation8 + $0xc8] sm:$0xf]
    %v1292 = vld [vmem:[#allocation8 + $0xcc] sm:$0xff]
    %v1293 = vld [vmem:[#allocation8 + $0xd4] sm:$0xf]
    %v1294 = vld [vmem:[#allocation8 + $0xd8] sm:$0xff]
    %v1295 = vld [vmem:[#allocation8 + $0xe0] sm:$0xf]
    %v1296 = vld [vmem:[#allocation8 + $0xe4] sm:$0xff]
    %v1297 = vld [vmem:[#allocation8 + $0xec] sm:$0xf]
    %v1298 = vld [vmem:[#allocation8 + $0xf0] sm:$0xff]
    %v1299 = vld [vmem:[#allocation8 + $0xf8] sm:$0xf]
    %v1300 = vld [vmem:[#allocation8 + $0xfc] sm:$0xff]
    %v1301 = vld [vmem:[#allocation8 + $0x104] sm:$0xf]
    %v1302 = vld [vmem:[#allocation8 + $0x108] sm:$0xff]
    %v1303 = vld [vmem:[#allocation8 + $0x110] sm:$0xf]
    %v1304 = vld [vmem:[#allocation8 + $0x114] sm:$0xff]
    %v1305 = vld [vmem:[#allocation8 + $0x11c] sm:$0xf]
    %v1306 = vld [vmem:[#allocation8 + $0x120] sm:$0xff]
    %v1307 = vld [vmem:[#allocation8 + $0x128] sm:$0xf]
    %v1308 = vld [vmem:[#allocation8 + $0x12c] sm:$0xff]
    %v1309 = vld [vmem:[#allocation8 + $0x134] sm:$0xf]
    %v1310 = vld [vmem:[#allocation8 + $0x138] sm:$0xff]
    %v1311 = vld [vmem:[#allocation8 + $0x140] sm:$0xf]
    %v1312 = vld [vmem:[#allocation8 + $0x144] sm:$0xff]
    %v1313 = vld [vmem:[#allocation8 + $0x14c] sm:$0xf]
    %v1314 = vld [vmem:[#allocation8 + $0x150] sm:$0xff]
    %v1315 = vld [vmem:[#allocation8 + $0x158] sm:$0xf]
    %v1316 = vld [vmem:[#allocation8 + $0x15c] sm:$0xff]
    %v1317 = vld [vmem:[#allocation8 + $0x164] sm:$0xf]
    %v1318 = vld [vmem:[#allocation8 + $0x168] sm:$0xff]
    %v1319 = vld [vmem:[#allocation8 + $0x170] sm:$0xf]
    %v1320 = vld [vmem:[#allocation8 + $0x174] sm:$0xff]
    %v1321 = vld [vmem:[#allocation8 + $0x17c] sm:$0xf]
    %v1322 = vld [vmem:[#allocation8 + $0x180] sm:$0xff]
    %v1323 = vld [vmem:[#allocation8 + $0x188] sm:$0xf]
    %v1324 = vld [vmem:[#allocation8 + $0x18c] sm:$0xff]
    %v1325 = vld [vmem:[#allocation8 + $0x194] sm:$0xf]
    %v1326 = vld [vmem:[#allocation8 + $0x198] sm:$0xff]
    %v1327 = vld [vmem:[#allocation8 + $0x1a0] sm:$0xf]
    %v1328 = vld [vmem:[#allocation8 + $0x1a4] sm:$0xff]
    %v1329 = vld [vmem:[#allocation8 + $0x1ac] sm:$0xf]
    %v1330 = vld [vmem:[#allocation8 + $0x1b0] sm:$0xff]
    %v1331 = vld [vmem:[#allocation8 + $0x1b8] sm:$0xf]
    %v1332 = vld [vmem:[#allocation8 + $0x1bc] sm:$0xff]
    %v1333 = vld [vmem:[#allocation8 + $0x1c4] sm:$0xf]
    %v1334 = vld [vmem:[#allocation8 + $0x1c8] sm:$0xff]
    %v1335 = vld [vmem:[#allocation8 + $0x1d0] sm:$0xf]
    %v1336 = vld [vmem:[#allocation8 + $0x1d4] sm:$0xff]
    %v1337 = vld [vmem:[#allocation8 + $0x1dc] sm:$0xf]
    %v1338 = vld [vmem:[#allocation8 + $0x1e0] sm:$0xff]
    %v1339 = vld [vmem:[#allocation8 + $0x1e8] sm:$0xf]
    %v1340 = vld [vmem:[#allocation8 + $0x1ec] sm:$0xff]
    %v1341 = vld [vmem:[#allocation8 + $0x1f4] sm:$0xf]
    %v1342 = vld [vmem:[#allocation8 + $0x1f8] sm:$0xff]
    %v1343 = vld [vmem:[#allocation8 + $0x200] sm:$0xf]
    %v1344 = vld [vmem:[#allocation8 + $0x204] sm:$0xff]
    %v1345 = vld [vmem:[#allocation8 + $0x20c] sm:$0xf]
    %v1346 = vld [vmem:[#allocation8 + $0x210] sm:$0xff]
    %v1347 = vld [vmem:[#allocation8 + $0x218] sm:$0xf]
    %v1348 = vld [vmem:[#allocation8 + $0x21c] sm:$0xff]
    %v1349 = vld [vmem:[#allocation8 + $0x224] sm:$0xf]
    %v1350 = vld [vmem:[#allocation8 + $0x228] sm:$0xff]
    %v1351 = vld [vmem:[#allocation8 + $0x230] sm:$0xf]
    %v1352 = vld [vmem:[#allocation8 + $0x234] sm:$0xff]
    %v1353 = vld [vmem:[#allocation8 + $0x23c] sm:$0xf]
    %v1354 = vld [vmem:[#allocation8 + $0x240] sm:$0xff]
    %v1355 = vld [vmem:[#allocation8 + $0x248] sm:$0xf]
    %v1356 = vld [vmem:[#allocation8 + $0x24c] sm:$0xff]
    %v1357 = vld [vmem:[#allocation8 + $0x254] sm:$0xf]
    %v1358 = vld [vmem:[#allocation8 + $0x258] sm:$0xff]
    %v1359 = vld [vmem:[#allocation8 + $0x260] sm:$0xf]
    %v1360 = vld [vmem:[#allocation8 + $0x264] sm:$0xff]
    %v1361 = vld [vmem:[#allocation8 + $0x26c] sm:$0xf]
    %v1362 = vld [vmem:[#allocation8 + $0x270] sm:$0xff]
    %v1363 = vld [vmem:[#allocation8 + $0x278] sm:$0xf]
    %v1364 = vld [vmem:[#allocation8 + $0x27c] sm:$0xff]
    %v1365 = vld [vmem:[#allocation8 + $0x284] sm:$0xf]
    %v1366 = vld [vmem:[#allocation8 + $0x288] sm:$0xff]
    %v1367 = vld [vmem:[#allocation8 + $0x290] sm:$0xf]
    %v1368 = vld [vmem:[#allocation8 + $0x294] sm:$0xff]
    %v1369 = vld [vmem:[#allocation8 + $0x29c] sm:$0xf]
    %v1370 = vld [vmem:[#allocation8 + $0x2a0] sm:$0xff]
    %v1371 = vld [vmem:[#allocation8 + $0x2a8] sm:$0xf]
    %v1372 = vld [vmem:[#allocation8 + $0x2ac] sm:$0xff]
    %v1373 = vld [vmem:[#allocation8 + $0x2b4] sm:$0xf]
    %v1374 = vld [vmem:[#allocation8 + $0x2b8] sm:$0xff]
    %v1375 = vld [vmem:[#allocation8 + $0x2c0] sm:$0xf]
    %v1376 = vld [vmem:[#allocation8 + $0x2c4] sm:$0xff]
    %v1377 = vld [vmem:[#allocation8 + $0x2cc] sm:$0xf]
    %v1378 = vld [vmem:[#allocation8 + $0x2d0] sm:$0xff]
    %v1379 = vld [vmem:[#allocation8 + $0x2d8] sm:$0xf]
    %v1380 = vld [vmem:[#allocation8 + $0x2dc] sm:$0xff]
    %v1381 = vld [vmem:[#allocation8 + $0x2e4] sm:$0xf]
    %v1382 = vld [vmem:[#allocation8 + $0x2e8] sm:$0xff]
    %v1383 = vld [vmem:[#allocation8 + $0x2f0] sm:$0xf]
    %v1384 = vld [vmem:[#allocation8 + $0x2f4] sm:$0xff]
    %v1385 = vld [vmem:[#allocation8 + $0x2fc] sm:$0xf]
    %v1386 = vld [vmem:[%s10] sm:$0x7]
    %v1388 = vlaneseq
    %v1389 = vshrl.u32 %v1388, 7
    %v1390 = vsub.s32 0, %v1389
    %v1391 = vrot.slane %v1386, %v1390
    %v1392 = vlaneseq
    %v1393 = vshrl.u32 %v1392, 7
    %v1394 = vsub.s32 1, %v1393
    %v1395 = vrot.slane %v1386, %v1394
    %v1396 = vlaneseq
    %v1397 = vshrl.u32 %v1396, 7
    %v1398 = vsub.s32 2, %v1397
    %v1399 = vrot.slane %v1386, %v1398
    %v1531 = vunpack.c.l.b16 %v1258
    %v1532 = vunpack.c.h.b16 %v1258
    %v1533 = vunpack.c.l.b16 %v1259
    %v1534 = vunpack.c.l.b16 %v1260
    %v1535 = vunpack.c.h.b16 %v1260
    %v1536 = vunpack.c.l.b16 %v1261
    %v1537 = vunpack.c.l.b16 %v1262
    %v1538 = vunpack.c.h.b16 %v1262
    %v1539 = vunpack.c.l.b16 %v1263
    %v1540 = vunpack.c.l.b16 %v1264
    %v1541 = vunpack.c.h.b16 %v1264
    %v1542 = vunpack.c.l.b16 %v1265
    %v1543 = vunpack.c.l.b16 %v1266
    %v1544 = vunpack.c.h.b16 %v1266
    %v1545 = vunpack.c.l.b16 %v1267
    %v1546 = vunpack.c.l.b16 %v1268
    %v1547 = vunpack.c.h.b16 %v1268
    %v1548 = vunpack.c.l.b16 %v1269
    %v1549 = vunpack.c.l.b16 %v1270
    %v1550 = vunpack.c.h.b16 %v1270
    %v1551 = vunpack.c.l.b16 %v1271
    %v1552 = vunpack.c.l.b16 %v1272
    %v1553 = vunpack.c.h.b16 %v1272
    %v1554 = vunpack.c.l.b16 %v1273
    %v1555 = vunpack.c.l.b16 %v1274
    %v1556 = vunpack.c.h.b16 %v1274
    %v1557 = vunpack.c.l.b16 %v1275
    %v1558 = vunpack.c.l.b16 %v1276
    %v1559 = vunpack.c.h.b16 %v1276
    %v1560 = vunpack.c.l.b16 %v1277
    %v1561 = vunpack.c.l.b16 %v1278
    %v1562 = vunpack.c.h.b16 %v1278
    %v1563 = vunpack.c.l.b16 %v1279
    %v1564 = vunpack.c.l.b16 %v1280
    %v1565 = vunpack.c.h.b16 %v1280
    %v1566 = vunpack.c.l.b16 %v1281
    %v1567 = vunpack.c.l.b16 %v1282
    %v1568 = vunpack.c.h.b16 %v1282
    %v1569 = vunpack.c.l.b16 %v1283
    %v1570 = vunpack.c.l.b16 %v1284
    %v1571 = vunpack.c.h.b16 %v1284
    %v1572 = vunpack.c.l.b16 %v1285
    %v1573 = vunpack.c.l.b16 %v1286
    %v1574 = vunpack.c.h.b16 %v1286
    %v1575 = vunpack.c.l.b16 %v1287
    %v1576 = vunpack.c.l.b16 %v1288
    %v1577 = vunpack.c.h.b16 %v1288
    %v1578 = vunpack.c.l.b16 %v1289
    %v1579 = vunpack.c.l.b16 %v1290
    %v1580 = vunpack.c.h.b16 %v1290
    %v1581 = vunpack.c.l.b16 %v1291
    %v1582 = vunpack.c.l.b16 %v1292
    %v1583 = vunpack.c.h.b16 %v1292
    %v1584 = vunpack.c.l.b16 %v1293
    %v1585 = vunpack.c.l.b16 %v1294
    %v1586 = vunpack.c.h.b16 %v1294
    %v1587 = vunpack.c.l.b16 %v1295
    %v1588 = vunpack.c.l.b16 %v1296
    %v1589 = vunpack.c.h.b16 %v1296
    %v1590 = vunpack.c.l.b16 %v1297
    %v1591 = vunpack.c.l.b16 %v1298
    %v1592 = vunpack.c.h.b16 %v1298
    %v1593 = vunpack.c.l.b16 %v1299
    %v1594 = vunpack.c.l.b16 %v1300
    %v1595 = vunpack.c.h.b16 %v1300
    %v1596 = vunpack.c.l.b16 %v1301
    %v1597 = vunpack.c.l.b16 %v1302
    %v1598 = vunpack.c.h.b16 %v1302
    %v1599 = vunpack.c.l.b16 %v1303
    %v1600 = vunpack.c.l.b16 %v1304
    %v1601 = vunpack.c.h.b16 %v1304
    %v1602 = vunpack.c.l.b16 %v1305
    %v1603 = vunpack.c.l.b16 %v1306
    %v1604 = vunpack.c.h.b16 %v1306
    %v1605 = vunpack.c.l.b16 %v1307
    %v1606 = vunpack.c.l.b16 %v1308
    %v1607 = vunpack.c.h.b16 %v1308
    %v1608 = vunpack.c.l.b16 %v1309
    %v1609 = vunpack.c.l.b16 %v1310
    %v1610 = vunpack.c.h.b16 %v1310
    %v1611 = vunpack.c.l.b16 %v1311
    %v1612 = vunpack.c.l.b16 %v1312
    %v1613 = vunpack.c.h.b16 %v1312
    %v1614 = vunpack.c.l.b16 %v1313
    %v1615 = vunpack.c.l.b16 %v1314
    %v1616 = vunpack.c.h.b16 %v1314
    %v1617 = vunpack.c.l.b16 %v1315
    %v1618 = vunpack.c.l.b16 %v1316
    %v1619 = vunpack.c.h.b16 %v1316
    %v1620 = vunpack.c.l.b16 %v1317
    %v1621 = vunpack.c.l.b16 %v1318
    %v1622 = vunpack.c.h.b16 %v1318
    %v1623 = vunpack.c.l.b16 %v1319
    %v1624 = vunpack.c.l.b16 %v1320
    %v1625 = vunpack.c.h.b16 %v1320
    %v1626 = vunpack.c.l.b16 %v1321
    %v1627 = vunpack.c.l.b16 %v1322
    %v1628 = vunpack.c.h.b16 %v1322
    %v1629 = vunpack.c.l.b16 %v1323
    %v1630 = vunpack.c.l.b16 %v1324
    %v1631 = vunpack.c.h.b16 %v1324
    %v1632 = vunpack.c.l.b16 %v1325
    %v1633 = vunpack.c.l.b16 %v1326
    %v1634 = vunpack.c.h.b16 %v1326
    %v1635 = vunpack.c.l.b16 %v1327
    %v1636 = vunpack.c.l.b16 %v1328
    %v1637 = vunpack.c.h.b16 %v1328
    %v1638 = vunpack.c.l.b16 %v1329
    %v1639 = vunpack.c.l.b16 %v1330
    %v1640 = vunpack.c.h.b16 %v1330
    %v1641 = vunpack.c.l.b16 %v1331
    %v1642 = vunpack.c.l.b16 %v1332
    %v1643 = vunpack.c.h.b16 %v1332
    %v1644 = vunpack.c.l.b16 %v1333
    %v1645 = vunpack.c.l.b16 %v1334
    %v1646 = vunpack.c.h.b16 %v1334
    %v1647 = vunpack.c.l.b16 %v1335
    %v1648 = vunpack.c.l.b16 %v1336
    %v1649 = vunpack.c.h.b16 %v1336
    %v1650 = vunpack.c.l.b16 %v1337
    %v1651 = vunpack.c.l.b16 %v1338
    %v1652 = vunpack.c.h.b16 %v1338
    %v1653 = vunpack.c.l.b16 %v1339
    %v1654 = vunpack.c.l.b16 %v1340
    %v1655 = vunpack.c.h.b16 %v1340
    %v1656 = vunpack.c.l.b16 %v1341
    %v1657 = vunpack.c.l.b16 %v1342
    %v1658 = vunpack.c.h.b16 %v1342
    %v1659 = vunpack.c.l.b16 %v1343
    %v1660 = vunpack.c.l.b16 %v1344
    %v1661 = vunpack.c.h.b16 %v1344
    %v1662 = vunpack.c.l.b16 %v1345
    %v1663 = vunpack.c.l.b16 %v1346
    %v1664 = vunpack.c.h.b16 %v1346
    %v1665 = vunpack.c.l.b16 %v1347
    %v1666 = vunpack.c.l.b16 %v1348
    %v1667 = vunpack.c.h.b16 %v1348
    %v1668 = vunpack.c.l.b16 %v1349
    %v1669 = vunpack.c.l.b16 %v1350
    %v1670 = vunpack.c.h.b16 %v1350
    %v1671 = vunpack.c.l.b16 %v1351
    %v1672 = vunpack.c.l.b16 %v1352
    %v1673 = vunpack.c.h.b16 %v1352
    %v1674 = vunpack.c.l.b16 %v1353
    %v1675 = vunpack.c.l.b16 %v1354
    %v1676 = vunpack.c.h.b16 %v1354
    %v1677 = vunpack.c.l.b16 %v1355
    %v1678 = vunpack.c.l.b16 %v1356
    %v1679 = vunpack.c.h.b16 %v1356
    %v1680 = vunpack.c.l.b16 %v1357
    %v1681 = vunpack.c.l.b16 %v1358
    %v1682 = vunpack.c.h.b16 %v1358
    %v1683 = vunpack.c.l.b16 %v1359
    %v1684 = vunpack.c.l.b16 %v1360
    %v1685 = vunpack.c.h.b16 %v1360
    %v1686 = vunpack.c.l.b16 %v1361
    %v1687 = vunpack.c.l.b16 %v1362
    %v1688 = vunpack.c.h.b16 %v1362
    %v1689 = vunpack.c.l.b16 %v1363
    %v1690 = vunpack.c.l.b16 %v1364
    %v1691 = vunpack.c.h.b16 %v1364
    %v1692 = vunpack.c.l.b16 %v1365
    %v1693 = vunpack.c.l.b16 %v1366
    %v1694 = vunpack.c.h.b16 %v1366
    %v1695 = vunpack.c.l.b16 %v1367
    %v1696 = vunpack.c.l.b16 %v1368
    %v1697 = vunpack.c.h.b16 %v1368
    %v1698 = vunpack.c.l.b16 %v1369
    %v1699 = vunpack.c.l.b16 %v1370
    %v1700 = vunpack.c.h.b16 %v1370
    %v1701 = vunpack.c.l.b16 %v1371
    %v1702 = vunpack.c.l.b16 %v1372
    %v1703 = vunpack.c.h.b16 %v1372
    %v1704 = vunpack.c.l.b16 %v1373
    %v1705 = vunpack.c.l.b16 %v1374
    %v1706 = vunpack.c.h.b16 %v1374
    %v1707 = vunpack.c.l.b16 %v1375
    %v1708 = vunpack.c.l.b16 %v1376
    %v1709 = vunpack.c.h.b16 %v1376
    %v1710 = vunpack.c.l.b16 %v1377
    %v1711 = vunpack.c.l.b16 %v1378
    %v1712 = vunpack.c.h.b16 %v1378
    %v1713 = vunpack.c.l.b16 %v1379
    %v1714 = vunpack.c.l.b16 %v1380
    %v1715 = vunpack.c.h.b16 %v1380
    %v1716 = vunpack.c.l.b16 %v1381
    %v1717 = vunpack.c.l.b16 %v1382
    %v1718 = vunpack.c.h.b16 %v1382
    %v1719 = vunpack.c.l.b16 %v1383
    %v1720 = vunpack.c.l.b16 %v1384
    %v1721 = vunpack.c.h.b16 %v1384
    %v1722 = vunpack.c.l.b16 %v1385
    %v1723 = vpack.c.b16 %v1534, %v1531
    %v1724 = vpack.c.b16 %v1535, %v1532
    %v1725 = vpack.c.b16 %v1536, %v1533
    %v1726 = vpack.c.b16 %v1540, %v1537
    %v1727 = vpack.c.b16 %v1541, %v1538
    %v1728 = vpack.c.b16 %v1542, %v1539
    %v1729 = vpack.c.b16 %v1546, %v1543
    %v1730 = vpack.c.b16 %v1547, %v1544
    %v1731 = vpack.c.b16 %v1548, %v1545
    %v1732 = vpack.c.b16 %v1552, %v1549
    %v1733 = vpack.c.b16 %v1553, %v1550
    %v1734 = vpack.c.b16 %v1554, %v1551
    %v1735 = vpack.c.b16 %v1558, %v1555
    %v1736 = vpack.c.b16 %v1559, %v1556
    %v1737 = vpack.c.b16 %v1560, %v1557
    %v1738 = vpack.c.b16 %v1564, %v1561
    %v1739 = vpack.c.b16 %v1565, %v1562
    %v1740 = vpack.c.b16 %v1566, %v1563
    %v1741 = vpack.c.b16 %v1570, %v1567
    %v1742 = vpack.c.b16 %v1571, %v1568
    %v1743 = vpack.c.b16 %v1572, %v1569
    %v1744 = vpack.c.b16 %v1576, %v1573
    %v1745 = vpack.c.b16 %v1577, %v1574
    %v1746 = vpack.c.b16 %v1578, %v1575
    %v1747 = vpack.c.b16 %v1582, %v1579
    %v1748 = vpack.c.b16 %v1583, %v1580
    %v1749 = vpack.c.b16 %v1584, %v1581
    %v1750 = vpack.c.b16 %v1588, %v1585
    %v1751 = vpack.c.b16 %v1589, %v1586
    %v1752 = vpack.c.b16 %v1590, %v1587
    %v1753 = vpack.c.b16 %v1594, %v1591
    %v1754 = vpack.c.b16 %v1595, %v1592
    %v1755 = vpack.c.b16 %v1596, %v1593
    %v1756 = vpack.c.b16 %v1600, %v1597
    %v1757 = vpack.c.b16 %v1601, %v1598
    %v1758 = vpack.c.b16 %v1602, %v1599
    %v1759 = vpack.c.b16 %v1606, %v1603
    %v1760 = vpack.c.b16 %v1607, %v1604
    %v1761 = vpack.c.b16 %v1608, %v1605
    %v1762 = vpack.c.b16 %v1612, %v1609
    %v1763 = vpack.c.b16 %v1613, %v1610
    %v1764 = vpack.c.b16 %v1614, %v1611
    %v1765 = vpack.c.b16 %v1618, %v1615
    %v1766 = vpack.c.b16 %v1619, %v1616
    %v1767 = vpack.c.b16 %v1620, %v1617
    %v1768 = vpack.c.b16 %v1624, %v1621
    %v1769 = vpack.c.b16 %v1625, %v1622
    %v1770 = vpack.c.b16 %v1626, %v1623
    %v1771 = vpack.c.b16 %v1630, %v1627
    %v1772 = vpack.c.b16 %v1631, %v1628
    %v1773 = vpack.c.b16 %v1632, %v1629
    %v1774 = vpack.c.b16 %v1636, %v1633
    %v1775 = vpack.c.b16 %v1637, %v1634
    %v1776 = vpack.c.b16 %v1638, %v1635
    %v1777 = vpack.c.b16 %v1642, %v1639
    %v1778 = vpack.c.b16 %v1643, %v1640
    %v1779 = vpack.c.b16 %v1644, %v1641
    %v1780 = vpack.c.b16 %v1648, %v1645
    %v1781 = vpack.c.b16 %v1649, %v1646
    %v1782 = vpack.c.b16 %v1650, %v1647
    %v1783 = vpack.c.b16 %v1654, %v1651
    %v1784 = vpack.c.b16 %v1655, %v1652
    %v1785 = vpack.c.b16 %v1656, %v1653
    %v1786 = vpack.c.b16 %v1660, %v1657
    %v1787 = vpack.c.b16 %v1661, %v1658
    %v1788 = vpack.c.b16 %v1662, %v1659
    %v1789 = vpack.c.b16 %v1666, %v1663
    %v1790 = vpack.c.b16 %v1667, %v1664
    %v1791 = vpack.c.b16 %v1668, %v1665
    %v1792 = vpack.c.b16 %v1672, %v1669
    %v1793 = vpack.c.b16 %v1673, %v1670
    %v1794 = vpack.c.b16 %v1674, %v1671
    %v1795 = vpack.c.b16 %v1678, %v1675
    %v1796 = vpack.c.b16 %v1679, %v1676
    %v1797 = vpack.c.b16 %v1680, %v1677
    %v1798 = vpack.c.b16 %v1684, %v1681
    %v1799 = vpack.c.b16 %v1685, %v1682
    %v1800 = vpack.c.b16 %v1686, %v1683
    %v1801 = vpack.c.b16 %v1690, %v1687
    %v1802 = vpack.c.b16 %v1691, %v1688
    %v1803 = vpack.c.b16 %v1692, %v1689
    %v1804 = vpack.c.b16 %v1696, %v1693
    %v1805 = vpack.c.b16 %v1697, %v1694
    %v1806 = vpack.c.b16 %v1698, %v1695
    %v1807 = vpack.c.b16 %v1702, %v1699
    %v1808 = vpack.c.b16 %v1703, %v1700
    %v1809 = vpack.c.b16 %v1704, %v1701
    %v1810 = vpack.c.b16 %v1708, %v1705
    %v1811 = vpack.c.b16 %v1709, %v1706
    %v1812 = vpack.c.b16 %v1710, %v1707
    %v1813 = vpack.c.b16 %v1714, %v1711
    %v1814 = vpack.c.b16 %v1715, %v1712
    %v1815 = vpack.c.b16 %v1716, %v1713
    %v1816 = vpack.c.b16 %v1720, %v1717
    %v1817 = vpack.c.b16 %v1721, %v1718
    %v1818 = vpack.c.b16 %v1722, %v1719
    %1915 = vmatprep.subr.bf16.mxu0 %v1745
    %1916 = vmatpush1.bf16.msra.mxu0 %v1744
    %1917 = vmatprep.subr.bf16.mxu0 %v1742
    %1918 = vmatpush1.bf16.msra.mxu0 %v1741
    %1919 = vmatprep.subr.bf16.mxu0 %v1739
    %1920 = vmatpush1.bf16.msra.mxu0 %v1738
    %1921 = vmatprep.subr.bf16.mxu0 %v1736
    %1922 = vmatpush1.bf16.msra.mxu0 %v1735
    %1923 = vmatprep.subr.bf16.mxu0 %v1733
    %1924 = vmatpush1.bf16.msra.mxu0 %v1732
    %1925 = vmatprep.subr.bf16.mxu0 %v1730
    %1926 = vmatpush1.bf16.msra.mxu0 %v1729
    %1927 = vmatprep.subr.bf16.mxu0 %v1727
    %1928 = vmatpush1.bf16.msra.mxu0 %v1726
    %1929 = vmatprep.subr.bf16.mxu0 %v1724
    %1930 = vmatpush1.bf16.msra.mxu0 %v1723
    %1931 = vmatprep.subr.bf16.mxu0 %v1769
    %1932 = vmatpush2.bf16.msra.mxu0 %v1768
    %1933 = vmatprep.subr.bf16.mxu0 %v1766
    %1934 = vmatpush2.bf16.msra.mxu0 %v1765
    %1935 = vmatprep.subr.bf16.mxu0 %v1763
    %1936 = vmatpush2.bf16.msra.mxu0 %v1762
    %1937 = vmatprep.subr.bf16.mxu0 %v1760
    %1938 = vmatpush2.bf16.msra.mxu0 %v1759
    %1939 = vmatprep.subr.bf16.mxu0 %v1757
    %1940 = vmatpush2.bf16.msra.mxu0 %v1756
    %1941 = vmatprep.subr.bf16.mxu0 %v1754
    %1942 = vmatpush2.bf16.msra.mxu0 %v1753
    %1943 = vmatprep.subr.bf16.mxu0 %v1751
    %1944 = vmatpush2.bf16.msra.mxu0 %v1750
    %1945 = vmatprep.subr.bf16.mxu0 %v1748
    %1946 = vmatpush2.bf16.msra.mxu0 %v1747
    %1947 = vmatprep.mubr.bf16.mxu0 %v1255
    %1948 = vmatmul.mubr.bf16.gmra.mxu0 %v1254
    %v1949 = vpop.f32.mrf.mxu0
    %v1950 = vadd.f32 %v1391, %v1949
    %v1951 = vpop.f32.mrf.mxu0
    %v1952 = vadd.f32 %v1395, %v1951
    %v1953 = vpop.f32.mrf.mxu0
    %v1954 = vpop.f32.mrf.mxu0
    %1955 = vdwg.mxu0
    %1956 = vmatprep.subr.bf16.mxu0 %v1793
    %1957 = vmatpush1.bf16.msra.mxu0 %v1792
    %1958 = vmatprep.subr.bf16.mxu0 %v1790
    %1959 = vmatpush1.bf16.msra.mxu0 %v1789
    %1960 = vmatprep.subr.bf16.mxu0 %v1787
    %1961 = vmatpush1.bf16.msra.mxu0 %v1786
    %1962 = vmatprep.subr.bf16.mxu0 %v1784
    %1963 = vmatpush1.bf16.msra.mxu0 %v1783
    %1964 = vmatprep.subr.bf16.mxu0 %v1781
    %1965 = vmatpush1.bf16.msra.mxu0 %v1780
    %1966 = vmatprep.subr.bf16.mxu0 %v1778
    %1967 = vmatpush1.bf16.msra.mxu0 %v1777
    %1968 = vmatprep.subr.bf16.mxu0 %v1775
    %1969 = vmatpush1.bf16.msra.mxu0 %v1774
    %1970 = vmatprep.subr.bf16.mxu0 %v1772
    %1971 = vmatpush1.bf16.msra.mxu0 %v1771
    %1972 = vmatprep.subr.bf16.mxu0 %v1817
    %1973 = vmatpush2.bf16.msra.mxu0 %v1816
    %1974 = vmatprep.subr.bf16.mxu0 %v1814
    %1975 = vmatpush2.bf16.msra.mxu0 %v1813
    %1976 = vmatprep.subr.bf16.mxu0 %v1811
    %1977 = vmatpush2.bf16.msra.mxu0 %v1810
    %1978 = vmatprep.subr.bf16.mxu0 %v1808
    %1979 = vmatpush2.bf16.msra.mxu0 %v1807
    %1980 = vmatprep.subr.bf16.mxu0 %v1805
    %1981 = vmatpush2.bf16.msra.mxu0 %v1804
    %1982 = vmatprep.subr.bf16.mxu0 %v1802
    %1983 = vmatpush2.bf16.msra.mxu0 %v1801
    %1984 = vmatprep.subr.bf16.mxu0 %v1799
    %1985 = vmatpush2.bf16.msra.mxu0 %v1798
    %1986 = vmatprep.subr.bf16.mxu0 %v1796
    %1987 = vmatpush2.bf16.msra.mxu0 %v1795
    %1988 = vmatprep.mubr.bf16.mxu0 %v1257
    %1989 = vmatmul.mubr.bf16.gmra.mxu0 %v1256
    %v1990 = vpop.f32.mrf.mxu0
    %v1991 = vadd.f32 %v1950, %v1990
    %v1992 = vpop.f32.mrf.mxu0
    %v1993 = vadd.f32 %v1952, %v1992
    %v1994 = vpop.f32.mrf.mxu0
    %v1995 = vpop.f32.mrf.mxu0
    %1996 = vdwg.mxu0
    %1997 = vmatprep.subr.bf16.mxu0 0
    %1998 = vmatpush1.bf16.msra.mxu0 %v1746
    %1999 = vmatprep.subr.bf16.mxu0 0
    %2000 = vmatpush1.bf16.msra.mxu0 %v1743
    %2001 = vmatprep.subr.bf16.mxu0 0
    %2002 = vmatpush1.bf16.msra.mxu0 %v1740
    %2003 = vmatprep.subr.bf16.mxu0 0
    %2004 = vmatpush1.bf16.msra.mxu0 %v1737
    %2005 = vmatprep.subr.bf16.mxu0 0
    %2006 = vmatpush1.bf16.msra.mxu0 %v1734
    %2007 = vmatprep.subr.bf16.mxu0 0
    %2008 = vmatpush1.bf16.msra.mxu0 %v1731
    %2009 = vmatprep.subr.bf16.mxu0 0
    %2010 = vmatpush1.bf16.msra.mxu0 %v1728
    %2011 = vmatprep.subr.bf16.mxu0 0
    %2012 = vmatpush1.bf16.msra.mxu0 %v1725
    %2013 = vmatprep.subr.bf16.mxu0 0
    %2014 = vmatpush2.bf16.msra.mxu0 %v1770
    %2015 = vmatprep.subr.bf16.mxu0 0
    %2016 = vmatpush2.bf16.msra.mxu0 %v1767
    %2017 = vmatprep.subr.bf16.mxu0 0
    %2018 = vmatpush2.bf16.msra.mxu0 %v1764
    %2019 = vmatprep.subr.bf16.mxu0 0
    %2020 = vmatpush2.bf16.msra.mxu0 %v1761
    %2021 = vmatprep.subr.bf16.mxu0 0
    %2022 = vmatpush2.bf16.msra.mxu0 %v1758
    %2023 = vmatprep.subr.bf16.mxu0 0
    %2024 = vmatpush2.bf16.msra.mxu0 %v1755
    %2025 = vmatprep.subr.bf16.mxu0 0
    %2026 = vmatpush2.bf16.msra.mxu0 %v1752
    %2027 = vmatprep.subr.bf16.mxu0 0
    %2028 = vmatpush2.bf16.msra.mxu0 %v1749
    %2029 = vmatprep.mubr.bf16.mxu0 %v1255
    %2030 = vmatmul.mubr.bf16.gmra.mxu0 %v1254
    %v2031 = vpop.f32.mrf.mxu0
    %v2032 = vadd.f32 %v1399, %v2031
    %v2033 = vpop.f32.mrf.mxu0
    %v2034 = vpop.f32.mrf.mxu0
    %v2035 = vpop.f32.mrf.mxu0
    %2036 = vdwg.mxu0
    %2037 = vmatprep.subr.bf16.mxu0 0
    %2038 = vmatpush1.bf16.msra.mxu0 %v1794
    %2039 = vmatprep.subr.bf16.mxu0 0
    %2040 = vmatpush1.bf16.msra.mxu0 %v1791
    %2041 = vmatprep.subr.bf16.mxu0 0
    %2042 = vmatpush1.bf16.msra.mxu0 %v1788
    %2043 = vmatprep.subr.bf16.mxu0 0
    %2044 = vmatpush1.bf16.msra.mxu0 %v1785
    %2045 = vmatprep.subr.bf16.mxu0 0
    %2046 = vmatpush1.bf16.msra.mxu0 %v1782
    %2047 = vmatprep.subr.bf16.mxu0 0
    %2048 = vmatpush1.bf16.msra.mxu0 %v1779
    %2049 = vmatprep.subr.bf16.mxu0 0
    %2050 = vmatpush1.bf16.msra.mxu0 %v1776
    %2051 = vmatprep.subr.bf16.mxu0 0
    %2052 = vmatpush1.bf16.msra.mxu0 %v1773
    %2053 = vmatprep.subr.bf16.mxu0 0
    %2054 = vmatpush2.bf16.msra.mxu0 %v1818
    %2055 = vmatprep.subr.bf16.mxu0 0
    %2056 = vmatpush2.bf16.msra.mxu0 %v1815
    %2057 = vmatprep.subr.bf16.mxu0 0
    %2058 = vmatpush2.bf16.msra.mxu0 %v1812
    %2059 = vmatprep.subr.bf16.mxu0 0
    %2060 = vmatpush2.bf16.msra.mxu0 %v1809
    %2061 = vmatprep.subr.bf16.mxu0 0
    %2062 = vmatpush2.bf16.msra.mxu0 %v1806
    %2063 = vmatprep.subr.bf16.mxu0 0
    %2064 = vmatpush2.bf16.msra.mxu0 %v1803
    %2065 = vmatprep.subr.bf16.mxu0 0
    %2066 = vmatpush2.bf16.msra.mxu0 %v1800
    %2067 = vmatprep.subr.bf16.mxu0 0
    %2068 = vmatpush2.bf16.msra.mxu0 %v1797
    %2069 = vmatprep.mubr.bf16.mxu0 %v1257
    %2070 = vmatmul.mubr.bf16.gmra.mxu0 %v1256
    %v2071 = vpop.f32.mrf.mxu0
    %v2072 = vadd.f32 %v2032, %v2071
    %v2073 = vpop.f32.mrf.mxu0
    %v2074 = vpop.f32.mrf.mxu0
    %v2075 = vpop.f32.mrf.mxu0
    %2076 = vdwg.mxu0
    %v2077 = vadd.f32 %v1991, %v2072
    %v2078 = vxor.u32 %v1993, 2147483648
    %v2079 = vmul.f32 %v2078, 1.442695
    %v2080 = vpow.pop %v2079
    %v2081 = vadd.f32 %v2080, 1.0
    %v2082 = vrcp.pop %v2081
    %v2083 = vmul.f32 1.0, %v2082
    %v2084 = vmul.f32 %v2077, %v2083
    %vm2085 = vcmask 1041408
    %v2086 = vsel %vm2085, %v2084, 0.0
    %2087 = vadd.xlane.f32.xlu0 %v2086
    %v2088 = vpop.xlane.xlu0 %2087
    %v2089 = vmul.f32 %v2088, %v1210
    %v2090 = vsub.f32 %v2084, %v2089
    %v2091 = vmul.f32 %v2090, %v2090
    %v2092 = vsel %vm2085, %v2091, 0.0
    %2093 = vadd.xlane.f32.xlu0 %v2092
    %v2094 = vpop.xlane.xlu0 %2093
    %v2095 = vmul.f32 %v2094, %v1210
    %v2096 = vadd.f32 %v2095, 1e-05
    %v2097 = vrsqrt.pop %v2096
    %v2098 = vmul.f32 %v2090, %v2097
    %v2099 = vld [vmem:[%s11] sm:$0x1]
    %v2101 = vlaneseq
    %v2102 = vshrl.u32 %v2101, 7
    %v2103 = vsub.s32 0, %v2102
    %v2104 = vrot.slane %v2099, %v2103
    %v2106 = vmul.f32 %v2098, %v2104
    %v2107 = vld [vmem:[%s12] sm:$0x1]
    %v2109 = vlaneseq
    %v2110 = vshrl.u32 %v2109, 7
    %v2111 = vsub.s32 0, %v2110
    %v2112 = vrot.slane %v2107, %v2111
    %v2114 = vadd.f32 %v2106, %v2112
    %v2115 = vpack.c.bf16 %v2114, %v2114
    %v2116 = vld [vmem:[#allocation10] sm:$0xf]
    %v2117 = vld [vmem:[#allocation10 + $0x4] sm:$0xf]
    %v2118 = vld [vmem:[#allocation10 + $0x8] sm:$0xf]
    %v2119 = vld [vmem:[#allocation10 + $0xc] sm:$0xf]
    %v2120 = vld [vmem:[#allocation10 + $0x10] sm:$0xf]
    %v2121 = vld [vmem:[#allocation10 + $0x14] sm:$0xf]
    %v2122 = vld [vmem:[#allocation10 + $0x18] sm:$0xf]
    %v2123 = vld [vmem:[#allocation10 + $0x1c] sm:$0xf]
    %v2124 = vld [vmem:[#allocation10 + $0x20] sm:$0xf]
    %v2125 = vld [vmem:[#allocation10 + $0x24] sm:$0xf]
    %v2126 = vld [vmem:[#allocation10 + $0x28] sm:$0xf]
    %v2127 = vld [vmem:[#allocation10 + $0x2c] sm:$0xf]
    %v2128 = vld [vmem:[#allocation10 + $0x30] sm:$0xf]
    %v2129 = vld [vmem:[#allocation10 + $0x34] sm:$0xf]
    %v2130 = vld [vmem:[#allocation10 + $0x38] sm:$0xf]
    %v2131 = vld [vmem:[#allocation10 + $0x3c] sm:$0xf]
    %v2132 = vld [vmem:[%s14] sm:$0x1]
    %v2134 = vlaneseq
    %v2135 = vshrl.u32 %v2134, 7
    %v2136 = vsub.s32 0, %v2135
    %v2137 = vrot.slane %v2132, %v2136
    %v2155 = vunpack.c.l.b16 %v2116
    %v2156 = vunpack.c.l.b16 %v2117
    %v2157 = vunpack.c.l.b16 %v2118
    %v2158 = vunpack.c.l.b16 %v2119
    %v2159 = vunpack.c.l.b16 %v2120
    %v2160 = vunpack.c.l.b16 %v2121
    %v2161 = vunpack.c.l.b16 %v2122
    %v2162 = vunpack.c.l.b16 %v2123
    %v2163 = vunpack.c.l.b16 %v2124
    %v2164 = vunpack.c.l.b16 %v2125
    %v2165 = vunpack.c.l.b16 %v2126
    %v2166 = vunpack.c.l.b16 %v2127
    %v2167 = vunpack.c.l.b16 %v2128
    %v2168 = vunpack.c.l.b16 %v2129
    %v2169 = vunpack.c.l.b16 %v2130
    %v2170 = vunpack.c.l.b16 %v2131
    %v2171 = vpack.c.b16 %v2156, %v2155
    %v2172 = vpack.c.b16 %v2158, %v2157
    %v2173 = vpack.c.b16 %v2160, %v2159
    %v2174 = vpack.c.b16 %v2162, %v2161
    %v2175 = vpack.c.b16 %v2164, %v2163
    %v2176 = vpack.c.b16 %v2166, %v2165
    %v2177 = vpack.c.b16 %v2168, %v2167
    %v2178 = vpack.c.b16 %v2170, %v2169
    %2187 = vmatprep.subr.bf16.mxu0 0
    %2188 = vmatpush1.bf16.msra.mxu0 %v2178
    %2189 = vmatprep.subr.bf16.mxu0 0
    %2190 = vmatpush1.bf16.msra.mxu0 %v2177
    %2191 = vmatprep.subr.bf16.mxu0 0
    %2192 = vmatpush1.bf16.msra.mxu0 %v2176
    %2193 = vmatprep.subr.bf16.mxu0 0
    %2194 = vmatpush1.bf16.msra.mxu0 %v2175
    %2195 = vmatprep.subr.bf16.mxu0 0
    %2196 = vmatpush1.bf16.msra.mxu0 %v2174
    %2197 = vmatprep.subr.bf16.mxu0 0
    %2198 = vmatpush1.bf16.msra.mxu0 %v2173
    %2199 = vmatprep.subr.bf16.mxu0 0
    %2200 = vmatpush1.bf16.msra.mxu0 %v2172
    %2201 = vmatprep.subr.bf16.mxu0 0
    %2202 = vmatpush1.bf16.msra.mxu0 %v2171
    %2203 = vmatprep.subr.bf16.mxu0 0
    %2204 = vmatpush2.bf16.msra.mxu0 0
    %2205 = vmatprep.subr.bf16.mxu0 0
    %2206 = vmatpush2.bf16.msra.mxu0 0
    %2207 = vmatprep.subr.bf16.mxu0 0
    %2208 = vmatpush2.bf16.msra.mxu0 0
    %2209 = vmatprep.subr.bf16.mxu0 0
    %2210 = vmatpush2.bf16.msra.mxu0 0
    %2211 = vmatprep.subr.bf16.mxu0 0
    %2212 = vmatpush2.bf16.msra.mxu0 0
    %2213 = vmatprep.subr.bf16.mxu0 0
    %2214 = vmatpush2.bf16.msra.mxu0 0
    %2215 = vmatprep.subr.bf16.mxu0 0
    %2216 = vmatpush2.bf16.msra.mxu0 0
    %2217 = vmatprep.subr.bf16.mxu0 0
    %2218 = vmatpush2.bf16.msra.mxu0 0
    %2219 = vmatprep.mubr.bf16.mxu0 0
    %2220 = vmatmul.mubr.bf16.gmra.mxu0 %v2115
    %v2221 = vpop.f32.mrf.mxu0
    %v2222 = vadd.f32 %v2137, %v2221
    %v2223 = vpop.f32.mrf.mxu0
    %v2224 = vpop.f32.mrf.mxu0
    %v2225 = vpop.f32.mrf.mxu0
    %2226 = vdwg.mxu0
    %v2227 = vmax.f32 %v2222, 0.0
    %v2228 = vadd.f32 %v2227, 0.0
    %v2229 = vpack.c.bf16 %v2228, %v2228
    %v2230 = vld [vmem:[%s15] sm:$0xf]
    %v2231 = vld [vmem:[%s15 + $0x4] sm:$0xf]
    %v2232 = vld [vmem:[%s15 + $0x8] sm:$0xf]
    %v2233 = vld [vmem:[%s15 + $0xc] sm:$0xf]
    %v2234 = vld [vmem:[%s15 + $0x10] sm:$0xf]
    %v2235 = vld [vmem:[%s15 + $0x14] sm:$0xf]
    %v2236 = vld [vmem:[%s15 + $0x18] sm:$0xf]
    %v2237 = vld [vmem:[%s15 + $0x1c] sm:$0xf]
    %v2238 = vld [vmem:[%s15 + $0x20] sm:$0xf]
    %v2239 = vld [vmem:[%s15 + $0x24] sm:$0xf]
    %v2240 = vld [vmem:[%s15 + $0x28] sm:$0xf]
    %v2241 = vld [vmem:[%s15 + $0x2c] sm:$0xf]
    %v2242 = vld [vmem:[%s15 + $0x30] sm:$0xf]
    %v2243 = vld [vmem:[%s15 + $0x34] sm:$0xf]
    %v2244 = vld [vmem:[%s15 + $0x38] sm:$0xf]
    %v2245 = vld [vmem:[%s15 + $0x3c] sm:$0xf]
    %v2246 = vld [vmem:[#allocation2] sm:$0x1]
    %v2248 = vlaneseq
    %v2249 = vshrl.u32 %v2248, 7
    %v2250 = vsub.s32 0, %v2249
    %v2251 = vrot.slane %v2246, %v2250
    %v2269 = vunpack.c.l.b16 %v2230
    %v2270 = vunpack.c.l.b16 %v2231
    %v2271 = vunpack.c.l.b16 %v2232
    %v2272 = vunpack.c.l.b16 %v2233
    %v2273 = vunpack.c.l.b16 %v2234
    %v2274 = vunpack.c.l.b16 %v2235
    %v2275 = vunpack.c.l.b16 %v2236
    %v2276 = vunpack.c.l.b16 %v2237
    %v2277 = vunpack.c.l.b16 %v2238
    %v2278 = vunpack.c.l.b16 %v2239
    %v2279 = vunpack.c.l.b16 %v2240
    %v2280 = vunpack.c.l.b16 %v2241
    %v2281 = vunpack.c.l.b16 %v2242
    %v2282 = vunpack.c.l.b16 %v2243
    %v2283 = vunpack.c.l.b16 %v2244
    %v2284 = vunpack.c.l.b16 %v2245
    %v2285 = vpack.c.b16 %v2270, %v2269
    %v2286 = vpack.c.b16 %v2272, %v2271
    %v2287 = vpack.c.b16 %v2274, %v2273
    %v2288 = vpack.c.b16 %v2276, %v2275
    %v2289 = vpack.c.b16 %v2278, %v2277
    %v2290 = vpack.c.b16 %v2280, %v2279
    %v2291 = vpack.c.b16 %v2282, %v2281
    %v2292 = vpack.c.b16 %v2284, %v2283
    %2301 = vmatprep.subr.bf16.mxu0 0
    %2302 = vmatpush1.bf16.msra.mxu0 %v2292
    %2303 = vmatprep.subr.bf16.mxu0 0
    %2304 = vmatpush1.bf16.msra.mxu0 %v2291
    %2305 = vmatprep.subr.bf16.mxu0 0
    %2306 = vmatpush1.bf16.msra.mxu0 %v2290
    %2307 = vmatprep.subr.bf16.mxu0 0
    %2308 = vmatpush1.bf16.msra.mxu0 %v2289
    %2309 = vmatprep.subr.bf16.mxu0 0
    %2310 = vmatpush1.bf16.msra.mxu0 %v2288
    %2311 = vmatprep.subr.bf16.mxu0 0
    %2312 = vmatpush1.bf16.msra.mxu0 %v2287
    %2313 = vmatprep.subr.bf16.mxu0 0
    %2314 = vmatpush1.bf16.msra.mxu0 %v2286
    %2315 = vmatprep.subr.bf16.mxu0 0
    %2316 = vmatpush1.bf16.msra.mxu0 %v2285
    %2317 = vmatprep.subr.bf16.mxu0 0
    %2318 = vmatpush2.bf16.msra.mxu0 0
    %2319 = vmatprep.subr.bf16.mxu0 0
    %2320 = vmatpush2.bf16.msra.mxu0 0
    %2321 = vmatprep.subr.bf16.mxu0 0
    %2322 = vmatpush2.bf16.msra.mxu0 0
    %2323 = vmatprep.subr.bf16.mxu0 0
    %2324 = vmatpush2.bf16.msra.mxu0 0
    %2325 = vmatprep.subr.bf16.mxu0 0
    %2326 = vmatpush2.bf16.msra.mxu0 0
    %2327 = vmatprep.subr.bf16.mxu0 0
    %2328 = vmatpush2.bf16.msra.mxu0 0
    %2329 = vmatprep.subr.bf16.mxu0 0
    %2330 = vmatpush2.bf16.msra.mxu0 0
    %2331 = vmatprep.subr.bf16.mxu0 0
    %2332 = vmatpush2.bf16.msra.mxu0 0
    %2333 = vmatprep.mubr.bf16.mxu0 0
    %2334 = vmatmul.mubr.bf16.gmra.mxu0 %v2229
    %v2335 = vpop.f32.mrf.mxu0
    %v2336 = vadd.f32 %v2251, %v2335
    %v2337 = vpop.f32.mrf.mxu0
    %v2338 = vpop.f32.mrf.mxu0
    %v2339 = vpop.f32.mrf.mxu0
    %2340 = vdwg.mxu0
    %vm2341 = vcmask 1024
    %2342 = vst.msk [vmem:[%s17] sm:$0x3] %vm2341, %v2336
    // Predicated region
    $region90: #{tpu_custom_call.1} parent=1 // pred_check
      _
    $region91: #{tpu_custom_call.1} parent=1 // pred_check_branch
      %2344 = sbr.rel (0) target = $region93
    $region92: #{tpu_custom_call.1} parent=1 // pred_region
      _
    $region93: #{tpu_custom_call.1} parent=1 // pred_fallthru
      _
    // Predicated region
    $region94: #{tpu_custom_call.1} parent=1 // pred_check
      _
    $region95: #{tpu_custom_call.1} parent=1 // pred_check_branch
      %2346 = sbr.rel (0) target = $region97
    $region96: #{tpu_custom_call.1} parent=1 // pred_region
      _
    $region97: #{tpu_custom_call.1} parent=1 // pred_fallthru
      _
    %2347 = vsyncpa [#allocation4], 1
    %2348 = vsyncpa [#allocation6], 1
    %2349 = vsyncpa [#allocation9], 1

</llo_original>
